<compile_context>
chip_gen: v7x
topology: tpu7x:2x2x1
jax: 0.10.0
libtpu: 0.0.40
codegen_flags: <defaults>
</compile_context>

<pallas_src>
import functools

import jax
import jax.numpy as jnp
from jax import lax
from jax.experimental import pallas as pl
from jax.experimental.pallas import tpu as pltpu

BN_EPS = 1e-5


# --------------------------------------------------------------------------
# Fused kernel: (Linear -> BN(batch stats) -> ReLU) x L  ->  Linear
# --------------------------------------------------------------------------
def _fused_mlp_readout_kernel(*refs, L):
    x_ref = refs[0]
    o_ref = refs[-1]
    p = refs[1:-1]            # [w0,b0,g0,bt0, ..., w_{L-1},b_{L-1},g_{L-1},bt_{L-1}, wL,bL]

    y = x_ref[...].astype(jnp.float32)
    idx = 0
    for _ in range(L):
        w, b, g, bt = p[idx], p[idx + 1], p[idx + 2], p[idx + 3]
        idx += 4
        # Linear (bias kept — exact module semantics).
        h = jnp.dot(y, w[...], preferred_element_type=jnp.float32) + b[...]
        # Train-mode BatchNorm1d: biased batch stats, centered two-pass in f32.
        mean = jnp.mean(h, axis=0, keepdims=True)
        c = h - mean
        var = jnp.mean(c * c, axis=0, keepdims=True)
        y = jnp.maximum(c * (g[...] * lax.rsqrt(var + BN_EPS)) + bt[...], 0.0)
    # Final Linear (bias kept).
    out = jnp.dot(y, p[idx][...], preferred_element_type=jnp.float32) + p[idx + 1][...]
    o_ref[...] = out.astype(o_ref.dtype)


# --------------------------------------------------------------------------
# Wrapper
# --------------------------------------------------------------------------
@functools.partial(jax.jit, static_argnames=("L",))
def mlp_readout(x, params, L=3):
    """params: flat list [w0,b0,g0,bt0, ..., wL,bL]; weights stored (in_dim, out_dim),
    biases / gammas / betas stored (1, out_dim)."""
    n = x.shape[0]
    out_dim = params[-2].shape[1]

    # Everything is VMEM-resident in the fused kernel — sanity-check footprint
    # against a conservative budget (safe even on v7x's 64 MiB physical VMEM /
    # 32 MiB default scoped limit).
    hidden_dims = [params[4 * l].shape[1] for l in range(L)]
    act_bytes = 4 * n * (x.shape[1] + sum(hidden_dims) + out_dim)   # f32 activations
    param_bytes = sum(int(a.size) * a.dtype.itemsize for a in params)
    in_bytes = int(x.size) * x.dtype.itemsize
    total = in_bytes + param_bytes + act_bytes
    assert total < 24 * 1024 * 1024, (
        f"fused MLPReadout footprint {total} B exceeds VMEM budget; "
        "a batch-streamed fallback is needed")
    # TODO(synk): batch-streamed fallback (grid over N + partial BN stats) for
    # large batches / widths that do not fit the fused-VMEM budget.

    vmem = pl.BlockSpec(memory_space=pltpu.MemorySpace.VMEM)
    return pl.pallas_call(
        functools.partial(_fused_mlp_readout_kernel, L=L),
        out_shape=jax.ShapeDtypeStruct((n, out_dim), jnp.float32),
        in_specs=[vmem] * (1 + len(params)),
        out_specs=vmem,
        compiler_params=pltpu.CompilerParams(vmem_limit_bytes=32 * 1024 * 1024),
    )(x, *params)


# --------------------------------------------------------------------------
# Parameters & reference
# --------------------------------------------------------------------------
def init_params(key, input_dim, output_dim, L=3):
    """Mimics nn.Linear (uniform +/- 1/sqrt(fan_in)) and nn.BatchNorm1d defaults."""
    params = []
    dims = [input_dim // (2 ** l) for l in range(L + 1)] + [output_dim]
    for l in range(L + 1):
        d_in, d_out = dims[l], dims[l + 1]
        key, kw, kb = jax.random.split(key, 3)
        bound = 1.0 / jnp.sqrt(jnp.float32(d_in))
        w = jax.random.uniform(kw, (d_in, d_out), jnp.float32, -bound, bound)
        b = jax.random.uniform(kb, (1, d_out), jnp.float32, -bound, bound)
        params += [w, b]
        if l < L:
            params += [jnp.ones((1, d_out), jnp.float32),    # gamma
                       jnp.zeros((1, d_out), jnp.float32)]   # beta
    return params


def mlp_readout_ref(x, params, L=3):
    """Pure-f32 reference of the PyTorch forward (train-mode BN, biases kept)."""
    y = x
    idx = 0
    for _ in range(L):
        w, b, g, bt = params[idx], params[idx + 1], params[idx + 2], params[idx + 3]
        idx += 4
        y = y @ w + b
        mean = jnp.mean(y, axis=0, keepdims=True)
        var = jnp.mean((y - mean) ** 2, axis=0, keepdims=True)
        y = (y - mean) / jnp.sqrt(var + BN_EPS) * g + bt
        y = jnp.maximum(y, 0.0)
    return y @ params[idx] + params[idx + 1]


# --------------------------------------------------------------------------
if __name__ == "__main__":
    INPUT_DIM = 64
    OUTPUT_DIM = 8
    L = 3
    N = 256

    key = jax.random.PRNGKey(0)
    key, kx = jax.random.split(key)
    x = jax.random.normal(kx, (N, INPUT_DIM), jnp.float32)

    params = init_params(key, INPUT_DIM, OUTPUT_DIM, L)

    out = jax.block_until_ready(mlp_readout(x, params, L=L))
    assert out.shape == (N, OUTPUT_DIM)

    ref = mlp_readout_ref(x, params, L)
    assert jnp.allclose(out, ref, atol=2e-2, rtol=2e-2), (
        "mismatch vs f32 module reference: max abs diff = "
        f"{float(jnp.max(jnp.abs(out - ref)))}")

    print("KERNEL_OK")
</pallas_src>

<mosaic_0001>
module attributes {stable_mosaic.version = 11 : i64} {
  func.func @_fused_mlp_readout_kernel(%arg0: memref<256x64xf32, #tpu.memory_space<vmem>>, %arg1: memref<64x32xf32, #tpu.memory_space<vmem>>, %arg2: memref<1x32xf32, #tpu.memory_space<vmem>>, %arg3: memref<1x32xf32, #tpu.memory_space<vmem>>, %arg4: memref<1x32xf32, #tpu.memory_space<vmem>>, %arg5: memref<32x16xf32, #tpu.memory_space<vmem>>, %arg6: memref<1x16xf32, #tpu.memory_space<vmem>>, %arg7: memref<1x16xf32, #tpu.memory_space<vmem>>, %arg8: memref<1x16xf32, #tpu.memory_space<vmem>>, %arg9: memref<16x8xf32, #tpu.memory_space<vmem>>, %arg10: memref<1x8xf32, #tpu.memory_space<vmem>>, %arg11: memref<1x8xf32, #tpu.memory_space<vmem>>, %arg12: memref<1x8xf32, #tpu.memory_space<vmem>>, %arg13: memref<8x8xf32, #tpu.memory_space<vmem>>, %arg14: memref<1x8xf32, #tpu.memory_space<vmem>>, %arg15: memref<256x8xf32, #tpu.memory_space<vmem>>) attributes {dimension_semantics = [], scalar_prefetch = 0 : i64, scratch_operands = 0 : i64, tpu.core_type = #tpu.core_type<tc>} {
    %c0 = arith.constant 0 : index
    %c0_0 = arith.constant 0 : index
    %0 = vector.load %arg0[%c0, %c0_0] : memref<256x64xf32, #tpu.memory_space<vmem>>, vector<256x64xf32>
    %c0_1 = arith.constant 0 : index
    %c0_2 = arith.constant 0 : index
    %1 = vector.load %arg1[%c0_1, %c0_2] : memref<64x32xf32, #tpu.memory_space<vmem>>, vector<64x32xf32>
    %cst = arith.constant dense<0.000000e+00> : vector<256x32xf32>
    %2 = tpu.matmul %0, %1, %cst {dimension_numbers = #tpu.dot_dimension_numbers<[1], [0], [0], [1], [0, 0, 1, 1], [], []>} : vector<256x64xf32>, vector<64x32xf32>, vector<256x32xf32> -> vector<256x32xf32>
    %c0_3 = arith.constant 0 : index
    %c0_4 = arith.constant 0 : index
    %3 = vector.load %arg2[%c0_3, %c0_4] : memref<1x32xf32, #tpu.memory_space<vmem>>, vector<1x32xf32>
    %4 = vector.broadcast %3 : vector<1x32xf32> to vector<256x32xf32>
    %5 = arith.addf %2, %4 : vector<256x32xf32>
    %cst_5 = arith.constant dense<0.000000e+00> : vector<32xf32>
    %6 = vector.multi_reduction <add>, %5, %cst_5 [0] : vector<256x32xf32> to vector<32xf32>
    %7 = vector.shape_cast %6 : vector<32xf32> to vector<1x32xf32>
    %cst_6 = arith.constant 2.560000e+02 : f32
    %8 = vector.broadcast %cst_6 : f32 to vector<1x32xf32>
    %9 = arith.divf %7, %8 : vector<1x32xf32>
    %10 = vector.broadcast %9 : vector<1x32xf32> to vector<256x32xf32>
    %11 = arith.subf %5, %10 : vector<256x32xf32>
    %12 = arith.mulf %11, %11 : vector<256x32xf32>
    %cst_7 = arith.constant dense<0.000000e+00> : vector<32xf32>
    %13 = vector.multi_reduction <add>, %12, %cst_7 [0] : vector<256x32xf32> to vector<32xf32>
    %14 = vector.shape_cast %13 : vector<32xf32> to vector<1x32xf32>
    %cst_8 = arith.constant 2.560000e+02 : f32
    %15 = vector.broadcast %cst_8 : f32 to vector<1x32xf32>
    %16 = arith.divf %14, %15 : vector<1x32xf32>
    %c0_9 = arith.constant 0 : index
    %c0_10 = arith.constant 0 : index
    %17 = vector.load %arg3[%c0_9, %c0_10] : memref<1x32xf32, #tpu.memory_space<vmem>>, vector<1x32xf32>
    %cst_11 = arith.constant 9.99999974E-6 : f32
    %18 = vector.broadcast %cst_11 : f32 to vector<1x32xf32>
    %19 = arith.addf %16, %18 : vector<1x32xf32>
    %20 = math.rsqrt %19 : vector<1x32xf32>
    %21 = arith.mulf %17, %20 : vector<1x32xf32>
    %22 = vector.broadcast %21 : vector<1x32xf32> to vector<256x32xf32>
    %23 = arith.mulf %11, %22 : vector<256x32xf32>
    %c0_12 = arith.constant 0 : index
    %c0_13 = arith.constant 0 : index
    %24 = vector.load %arg4[%c0_12, %c0_13] : memref<1x32xf32, #tpu.memory_space<vmem>>, vector<1x32xf32>
    %25 = vector.broadcast %24 : vector<1x32xf32> to vector<256x32xf32>
    %26 = arith.addf %23, %25 : vector<256x32xf32>
    %cst_14 = arith.constant 0.000000e+00 : f32
    %27 = vector.broadcast %cst_14 : f32 to vector<256x32xf32>
    %28 = arith.maximumf %26, %27 : vector<256x32xf32>
    %c0_15 = arith.constant 0 : index
    %c0_16 = arith.constant 0 : index
    %29 = vector.load %arg5[%c0_15, %c0_16] : memref<32x16xf32, #tpu.memory_space<vmem>>, vector<32x16xf32>
    %cst_17 = arith.constant dense<0.000000e+00> : vector<256x16xf32>
    %30 = tpu.matmul %28, %29, %cst_17 {dimension_numbers = #tpu.dot_dimension_numbers<[1], [0], [0], [1], [0, 0, 1, 1], [], []>} : vector<256x32xf32>, vector<32x16xf32>, vector<256x16xf32> -> vector<256x16xf32>
    %c0_18 = arith.constant 0 : index
    %c0_19 = arith.constant 0 : index
    %31 = vector.load %arg6[%c0_18, %c0_19] : memref<1x16xf32, #tpu.memory_space<vmem>>, vector<1x16xf32>
    %32 = vector.broadcast %31 : vector<1x16xf32> to vector<256x16xf32>
    %33 = arith.addf %30, %32 : vector<256x16xf32>
    %cst_20 = arith.constant dense<0.000000e+00> : vector<16xf32>
    %34 = vector.multi_reduction <add>, %33, %cst_20 [0] : vector<256x16xf32> to vector<16xf32>
    %35 = vector.shape_cast %34 : vector<16xf32> to vector<1x16xf32>
    %cst_21 = arith.constant 2.560000e+02 : f32
    %36 = vector.broadcast %cst_21 : f32 to vector<1x16xf32>
    %37 = arith.divf %35, %36 : vector<1x16xf32>
    %38 = vector.broadcast %37 : vector<1x16xf32> to vector<256x16xf32>
    %39 = arith.subf %33, %38 : vector<256x16xf32>
    %40 = arith.mulf %39, %39 : vector<256x16xf32>
    %cst_22 = arith.constant dense<0.000000e+00> : vector<16xf32>
    %41 = vector.multi_reduction <add>, %40, %cst_22 [0] : vector<256x16xf32> to vector<16xf32>
    %42 = vector.shape_cast %41 : vector<16xf32> to vector<1x16xf32>
    %cst_23 = arith.constant 2.560000e+02 : f32
    %43 = vector.broadcast %cst_23 : f32 to vector<1x16xf32>
    %44 = arith.divf %42, %43 : vector<1x16xf32>
    %c0_24 = arith.constant 0 : index
    %c0_25 = arith.constant 0 : index
    %45 = vector.load %arg7[%c0_24, %c0_25] : memref<1x16xf32, #tpu.memory_space<vmem>>, vector<1x16xf32>
    %cst_26 = arith.constant 9.99999974E-6 : f32
    %46 = vector.broadcast %cst_26 : f32 to vector<1x16xf32>
    %47 = arith.addf %44, %46 : vector<1x16xf32>
    %48 = math.rsqrt %47 : vector<1x16xf32>
    %49 = arith.mulf %45, %48 : vector<1x16xf32>
    %50 = vector.broadcast %49 : vector<1x16xf32> to vector<256x16xf32>
    %51 = arith.mulf %39, %50 : vector<256x16xf32>
    %c0_27 = arith.constant 0 : index
    %c0_28 = arith.constant 0 : index
    %52 = vector.load %arg8[%c0_27, %c0_28] : memref<1x16xf32, #tpu.memory_space<vmem>>, vector<1x16xf32>
    %53 = vector.broadcast %52 : vector<1x16xf32> to vector<256x16xf32>
    %54 = arith.addf %51, %53 : vector<256x16xf32>
    %cst_29 = arith.constant 0.000000e+00 : f32
    %55 = vector.broadcast %cst_29 : f32 to vector<256x16xf32>
    %56 = arith.maximumf %54, %55 : vector<256x16xf32>
    %c0_30 = arith.constant 0 : index
    %c0_31 = arith.constant 0 : index
    %57 = vector.load %arg9[%c0_30, %c0_31] : memref<16x8xf32, #tpu.memory_space<vmem>>, vector<16x8xf32>
    %cst_32 = arith.constant dense<0.000000e+00> : vector<256x8xf32>
    %58 = tpu.matmul %56, %57, %cst_32 {dimension_numbers = #tpu.dot_dimension_numbers<[1], [0], [0], [1], [0, 0, 1, 1], [], []>} : vector<256x16xf32>, vector<16x8xf32>, vector<256x8xf32> -> vector<256x8xf32>
    %c0_33 = arith.constant 0 : index
    %c0_34 = arith.constant 0 : index
    %59 = vector.load %arg10[%c0_33, %c0_34] : memref<1x8xf32, #tpu.memory_space<vmem>>, vector<1x8xf32>
    %60 = vector.broadcast %59 : vector<1x8xf32> to vector<256x8xf32>
    %61 = arith.addf %58, %60 : vector<256x8xf32>
    %cst_35 = arith.constant dense<0.000000e+00> : vector<8xf32>
    %62 = vector.multi_reduction <add>, %61, %cst_35 [0] : vector<256x8xf32> to vector<8xf32>
    %63 = vector.shape_cast %62 : vector<8xf32> to vector<1x8xf32>
    %cst_36 = arith.constant 2.560000e+02 : f32
    %64 = vector.broadcast %cst_36 : f32 to vector<1x8xf32>
    %65 = arith.divf %63, %64 : vector<1x8xf32>
    %66 = vector.broadcast %65 : vector<1x8xf32> to vector<256x8xf32>
    %67 = arith.subf %61, %66 : vector<256x8xf32>
    %68 = arith.mulf %67, %67 : vector<256x8xf32>
    %cst_37 = arith.constant dense<0.000000e+00> : vector<8xf32>
    %69 = vector.multi_reduction <add>, %68, %cst_37 [0] : vector<256x8xf32> to vector<8xf32>
    %70 = vector.shape_cast %69 : vector<8xf32> to vector<1x8xf32>
    %cst_38 = arith.constant 2.560000e+02 : f32
    %71 = vector.broadcast %cst_38 : f32 to vector<1x8xf32>
    %72 = arith.divf %70, %71 : vector<1x8xf32>
    %c0_39 = arith.constant 0 : index
    %c0_40 = arith.constant 0 : index
    %73 = vector.load %arg11[%c0_39, %c0_40] : memref<1x8xf32, #tpu.memory_space<vmem>>, vector<1x8xf32>
    %cst_41 = arith.constant 9.99999974E-6 : f32
    %74 = vector.broadcast %cst_41 : f32 to vector<1x8xf32>
    %75 = arith.addf %72, %74 : vector<1x8xf32>
    %76 = math.rsqrt %75 : vector<1x8xf32>
    %77 = arith.mulf %73, %76 : vector<1x8xf32>
    %78 = vector.broadcast %77 : vector<1x8xf32> to vector<256x8xf32>
    %79 = arith.mulf %67, %78 : vector<256x8xf32>
    %c0_42 = arith.constant 0 : index
    %c0_43 = arith.constant 0 : index
    %80 = vector.load %arg12[%c0_42, %c0_43] : memref<1x8xf32, #tpu.memory_space<vmem>>, vector<1x8xf32>
    %81 = vector.broadcast %80 : vector<1x8xf32> to vector<256x8xf32>
    %82 = arith.addf %79, %81 : vector<256x8xf32>
    %cst_44 = arith.constant 0.000000e+00 : f32
    %83 = vector.broadcast %cst_44 : f32 to vector<256x8xf32>
    %84 = arith.maximumf %82, %83 : vector<256x8xf32>
    %c0_45 = arith.constant 0 : index
    %c0_46 = arith.constant 0 : index
    %85 = vector.load %arg13[%c0_45, %c0_46] : memref<8x8xf32, #tpu.memory_space<vmem>>, vector<8x8xf32>
    %cst_47 = arith.constant dense<0.000000e+00> : vector<256x8xf32>
    %86 = tpu.matmul %84, %85, %cst_47 {dimension_numbers = #tpu.dot_dimension_numbers<[1], [0], [0], [1], [0, 0, 1, 1], [], []>} : vector<256x8xf32>, vector<8x8xf32>, vector<256x8xf32> -> vector<256x8xf32>
    %c0_48 = arith.constant 0 : index
    %c0_49 = arith.constant 0 : index
    %87 = vector.load %arg14[%c0_48, %c0_49] : memref<1x8xf32, #tpu.memory_space<vmem>>, vector<1x8xf32>
    %88 = vector.broadcast %87 : vector<1x8xf32> to vector<256x8xf32>
    %89 = arith.addf %86, %88 : vector<256x8xf32>
    %c0_50 = arith.constant 0 : index
    %c0_51 = arith.constant 0 : index
    %90 = vector.load %arg15[%c0_50, %c0_51] : memref<256x8xf32, #tpu.memory_space<vmem>>, vector<256x8xf32>
    tpu.vector_store %arg15[%c0_50, %c0_51], %89 {strides = array<i32>} : memref<256x8xf32, #tpu.memory_space<vmem>>, vector<256x8xf32>,
    return
  }
}

</mosaic_0001>

<llo_original>
// kernel: mlp_readout.1
$region0: #{mlp_readout.1}
  #allocation0 [shape = 'u32[]', space=smem, size = 0x4, offset = 0x4, fixed_abs, tag = 'smem constant byte address 0x4 - core index']
  #allocation1 [shape = 'u32[144,128]{1,0:T(1,128)}', space=vmem, size = 0x12000, scoped, tag = 'internal scratch']
  %s0 = inlined_call_operand.vmem [shape: f32[256,64], index: 0, kind: input, shape index: {}]
  %s1 = inlined_call_operand.vmem [shape: f32[64,32], index: 1, kind: input, shape index: {}]
  %s2 = inlined_call_operand.vmem [shape: f32[1,32], index: 2, kind: input, shape index: {}]
  %s3 = inlined_call_operand.vmem [shape: f32[1,32], index: 3, kind: input, shape index: {}]
  %s4 = inlined_call_operand.vmem [shape: f32[1,32], index: 4, kind: input, shape index: {}]
  %s5 = inlined_call_operand.vmem [shape: f32[32,16], index: 5, kind: input, shape index: {}]
  %s6 = inlined_call_operand.vmem [shape: f32[1,16], index: 6, kind: input, shape index: {}]
  %s7 = inlined_call_operand.vmem [shape: f32[1,16], index: 7, kind: input, shape index: {}]
  %s8 = inlined_call_operand.vmem [shape: f32[1,16], index: 8, kind: input, shape index: {}]
  %s9 = inlined_call_operand.vmem [shape: f32[16,8], index: 9, kind: input, shape index: {}]
  %s10 = inlined_call_operand.vmem [shape: f32[1,8], index: 10, kind: input, shape index: {}]
  %s11 = inlined_call_operand.vmem [shape: f32[1,8], index: 11, kind: input, shape index: {}]
  %s12 = inlined_call_operand.vmem [shape: f32[1,8], index: 12, kind: input, shape index: {}]
  %s13 = inlined_call_operand.vmem [shape: f32[8,8], index: 13, kind: input, shape index: {}]
  %s14 = inlined_call_operand.vmem [shape: f32[1,8], index: 14, kind: input, shape index: {}]
  %s15 = inlined_call_operand.vmem [shape: f32[256,8], index: 15, kind: output, shape index: {}]
  %s16 = sld [smem:[#allocation0]]
  $region70: #{mlp_readout.1} parent=0
    _
  %s18 = ssub.s32 1, %s16
  %s19 = scalar_select 0, %s18, %s16
  // Predicated region
  $region2: #{mlp_readout.1} parent=0 // pred_check
    _
  $region3: #{mlp_readout.1} parent=0 // pred_check_branch
    %21 = sbr.rel (0) target = $region5
  $region4: #{mlp_readout.1} parent=0 // pred_region
    _
  $region5: #{mlp_readout.1} parent=0 // pred_fallthru
    _
  // Predicated region
  $region6: #{mlp_readout.1} parent=0 // pred_check
    _
  $region7: #{mlp_readout.1} parent=0 // pred_check_branch
    %23 = sbr.rel (0) target = $region9
  $region8: #{mlp_readout.1} parent=0 // pred_region
    _
  $region9: #{mlp_readout.1} parent=0 // pred_fallthru
    _
  // Predicated region
  $region10: #{mlp_readout.1} parent=0 // pred_check
    _
  $region11: #{mlp_readout.1} parent=0 // pred_check_branch
    %25 = sbr.rel (0) target = $region13
  $region12: #{mlp_readout.1} parent=0 // pred_region
    _
  $region13: #{mlp_readout.1} parent=0 // pred_fallthru
    _
  // Predicated region
  $region14: #{mlp_readout.1} parent=0 // pred_check
    _
  $region15: #{mlp_readout.1} parent=0 // pred_check_branch
    %27 = sbr.rel (0) target = $region17
  $region16: #{mlp_readout.1} parent=0 // pred_region
    _
  $region17: #{mlp_readout.1} parent=0 // pred_fallthru
    _
  // Predicated region
  $region18: #{mlp_readout.1} parent=0 // pred_check
    _
  $region19: #{mlp_readout.1} parent=0 // pred_check_branch
    %29 = sbr.rel (0) target = $region21
  $region20: #{mlp_readout.1} parent=0 // pred_region
    _
  $region21: #{mlp_readout.1} parent=0 // pred_fallthru
    _
  // Predicated region
  $region22: #{mlp_readout.1} parent=0 // pred_check
    _
  $region23: #{mlp_readout.1} parent=0 // pred_check_branch
    %31 = sbr.rel (0) target = $region25
  $region24: #{mlp_readout.1} parent=0 // pred_region
    _
  $region25: #{mlp_readout.1} parent=0 // pred_fallthru
    _
  // Predicated region
  $region26: #{mlp_readout.1} parent=0 // pred_check
    _
  $region27: #{mlp_readout.1} parent=0 // pred_check_branch
    %33 = sbr.rel (0) target = $region29
  $region28: #{mlp_readout.1} parent=0 // pred_region
    _
  $region29: #{mlp_readout.1} parent=0 // pred_fallthru
    _
  // Predicated region
  $region30: #{mlp_readout.1} parent=0 // pred_check
    _
  $region31: #{mlp_readout.1} parent=0 // pred_check_branch
    %35 = sbr.rel (0) target = $region33
  $region32: #{mlp_readout.1} parent=0 // pred_region
    _
  $region33: #{mlp_readout.1} parent=0 // pred_fallthru
    _
  // Predicated region
  $region34: #{mlp_readout.1} parent=0 // pred_check
    _
  $region35: #{mlp_readout.1} parent=0 // pred_check_branch
    %37 = sbr.rel (0) target = $region37
  $region36: #{mlp_readout.1} parent=0 // pred_region
    _
  $region37: #{mlp_readout.1} parent=0 // pred_fallthru
    _
  // Predicated region
  $region38: #{mlp_readout.1} parent=0 // pred_check
    _
  $region39: #{mlp_readout.1} parent=0 // pred_check_branch
    %39 = sbr.rel (0) target = $region41
  $region40: #{mlp_readout.1} parent=0 // pred_region
    _
  $region41: #{mlp_readout.1} parent=0 // pred_fallthru
    _
  // Predicated region
  $region42: #{mlp_readout.1} parent=0 // pred_check
    _
  $region43: #{mlp_readout.1} parent=0 // pred_check_branch
    %41 = sbr.rel (0) target = $region45
  $region44: #{mlp_readout.1} parent=0 // pred_region
    _
  $region45: #{mlp_readout.1} parent=0 // pred_fallthru
    _
  // Predicated region
  $region46: #{mlp_readout.1} parent=0 // pred_check
    _
  $region47: #{mlp_readout.1} parent=0 // pred_check_branch
    %43 = sbr.rel (0) target = $region49
  $region48: #{mlp_readout.1} parent=0 // pred_region
    _
  $region49: #{mlp_readout.1} parent=0 // pred_fallthru
    _
  // Predicated region
  $region50: #{mlp_readout.1} parent=0 // pred_check
    _
  $region51: #{mlp_readout.1} parent=0 // pred_check_branch
    %45 = sbr.rel (0) target = $region53
  $region52: #{mlp_readout.1} parent=0 // pred_region
    _
  $region53: #{mlp_readout.1} parent=0 // pred_fallthru
    _
  // Predicated region
  $region54: #{mlp_readout.1} parent=0 // pred_check
    _
  $region55: #{mlp_readout.1} parent=0 // pred_check_branch
    %47 = sbr.rel (0) target = $region57
  $region56: #{mlp_readout.1} parent=0 // pred_region
    _
  $region57: #{mlp_readout.1} parent=0 // pred_fallthru
    _
  // Predicated region
  $region58: #{mlp_readout.1} parent=0 // pred_check
    _
  $region59: #{mlp_readout.1} parent=0 // pred_check_branch
    %49 = sbr.rel (0) target = $region61
  $region60: #{mlp_readout.1} parent=0 // pred_region
    _
  $region61: #{mlp_readout.1} parent=0 // pred_fallthru
    _
  %v50 = vld [vmem:[%s0] sm:$0xff]
  %v51 = vld [vmem:[%s0 + $0x8] sm:$0xff]
  %v52 = vld [vmem:[%s0 + $0x10] sm:$0xff]
  %v53 = vld [vmem:[%s0 + $0x18] sm:$0xff]
  %v54 = vld [vmem:[%s0 + $0x20] sm:$0xff]
  %v55 = vld [vmem:[%s0 + $0x28] sm:$0xff]
  %v56 = vld [vmem:[%s0 + $0x30] sm:$0xff]
  %v57 = vld [vmem:[%s0 + $0x38] sm:$0xff]
  %v58 = vld [vmem:[%s0 + $0x40] sm:$0xff]
  %v59 = vld [vmem:[%s0 + $0x48] sm:$0xff]
  %v60 = vld [vmem:[%s0 + $0x50] sm:$0xff]
  %v61 = vld [vmem:[%s0 + $0x58] sm:$0xff]
  %v62 = vld [vmem:[%s0 + $0x60] sm:$0xff]
  %v63 = vld [vmem:[%s0 + $0x68] sm:$0xff]
  %v64 = vld [vmem:[%s0 + $0x70] sm:$0xff]
  %v65 = vld [vmem:[%s0 + $0x78] sm:$0xff]
  %v66 = vld [vmem:[%s0 + $0x80] sm:$0xff]
  %v67 = vld [vmem:[%s0 + $0x88] sm:$0xff]
  %v68 = vld [vmem:[%s0 + $0x90] sm:$0xff]
  %v69 = vld [vmem:[%s0 + $0x98] sm:$0xff]
  %v70 = vld [vmem:[%s0 + $0xa0] sm:$0xff]
  %v71 = vld [vmem:[%s0 + $0xa8] sm:$0xff]
  %v72 = vld [vmem:[%s0 + $0xb0] sm:$0xff]
  %v73 = vld [vmem:[%s0 + $0xb8] sm:$0xff]
  %v74 = vld [vmem:[%s0 + $0xc0] sm:$0xff]
  %v75 = vld [vmem:[%s0 + $0xc8] sm:$0xff]
  %v76 = vld [vmem:[%s0 + $0xd0] sm:$0xff]
  %v77 = vld [vmem:[%s0 + $0xd8] sm:$0xff]
  %v78 = vld [vmem:[%s0 + $0xe0] sm:$0xff]
  %v79 = vld [vmem:[%s0 + $0xe8] sm:$0xff]
  %v80 = vld [vmem:[%s0 + $0xf0] sm:$0xff]
  %v81 = vld [vmem:[%s0 + $0xf8] sm:$0xff]
  %v82 = vld [vmem:[%s1] sm:$0xff]
  %v83 = vld [vmem:[%s1 + $0x8] sm:$0xff]
  %v84 = vld [vmem:[%s1 + $0x10] sm:$0xff]
  %v85 = vld [vmem:[%s1 + $0x18] sm:$0xff]
  %v86 = vld [vmem:[%s1 + $0x20] sm:$0xff]
  %v87 = vld [vmem:[%s1 + $0x28] sm:$0xff]
  %v88 = vld [vmem:[%s1 + $0x30] sm:$0xff]
  %v89 = vld [vmem:[%s1 + $0x38] sm:$0xff]
  %v90 = vld [vmem:[%s2] sm:$0x1]
  %v92 = vlaneseq
  %v93 = vshrl.u32 %v92, 7
  %v94 = vsub.s32 0, %v93
  %v95 = vrot.slane %v90, %v94
  %vm97 = vcmask 523264
  %v99 = vsel %vm97, %v50, 0
  %v102 = vsel %vm97, %v51, 0
  %v105 = vsel %vm97, %v52, 0
  %v108 = vsel %vm97, %v53, 0
  %v111 = vsel %vm97, %v54, 0
  %v114 = vsel %vm97, %v55, 0
  %v117 = vsel %vm97, %v56, 0
  %v120 = vsel %vm97, %v57, 0
  %v123 = vsel %vm97, %v58, 0
  %v126 = vsel %vm97, %v59, 0
  %v129 = vsel %vm97, %v60, 0
  %v132 = vsel %vm97, %v61, 0
  %v135 = vsel %vm97, %v62, 0
  %v138 = vsel %vm97, %v63, 0
  %v141 = vsel %vm97, %v64, 0
  %v144 = vsel %vm97, %v65, 0
  %v147 = vsel %vm97, %v66, 0
  %v150 = vsel %vm97, %v67, 0
  %v153 = vsel %vm97, %v68, 0
  %v156 = vsel %vm97, %v69, 0
  %v159 = vsel %vm97, %v70, 0
  %v162 = vsel %vm97, %v71, 0
  %v165 = vsel %vm97, %v72, 0
  %v168 = vsel %vm97, %v73, 0
  %v171 = vsel %vm97, %v74, 0
  %v174 = vsel %vm97, %v75, 0
  %v177 = vsel %vm97, %v76, 0
  %v180 = vsel %vm97, %v77, 0
  %v183 = vsel %vm97, %v78, 0
  %v186 = vsel %vm97, %v79, 0
  %v189 = vsel %vm97, %v80, 0
  %v192 = vsel %vm97, %v81, 0
  %194 = vmatprep.subr.mxu0 0.0
  %195 = vmatpush1.msra.mxu0 %v82
  %196 = vmatprep.subr.mxu0 0.0
  %197 = vmatpush1.msra.mxu0 %v83
  %198 = vmatprep.subr.mxu0 0.0
  %199 = vmatpush1.msra.mxu0 %v84
  %200 = vmatprep.subr.mxu0 0.0
  %201 = vmatpush1.msra.mxu0 %v85
  %202 = vmatprep.subr.mxu0 0.0
  %203 = vmatpush1.msra.mxu0 %v86
  %204 = vmatprep.subr.mxu0 0.0
  %205 = vmatpush1.msra.mxu0 %v87
  %206 = vmatprep.subr.mxu0 0.0
  %207 = vmatpush1.msra.mxu0 %v88
  %208 = vmatprep.subr.mxu0 0.0
  %209 = vmatpush1.msra.mxu0 %v89
  %210 = vmatprep.subr.mxu0 0.0
  %211 = vmatpush1.msra.mxu0 0.0
  %212 = vmatprep.subr.mxu0 0.0
  %213 = vmatpush1.msra.mxu0 0.0
  %214 = vmatprep.subr.mxu0 0.0
  %215 = vmatpush1.msra.mxu0 0.0
  %216 = vmatprep.subr.mxu0 0.0
  %217 = vmatpush1.msra.mxu0 0.0
  %218 = vmatprep.subr.mxu0 0.0
  %219 = vmatpush1.msra.mxu0 0.0
  %220 = vmatprep.subr.mxu0 0.0
  %221 = vmatpush1.msra.mxu0 0.0
  %222 = vmatprep.subr.mxu0 0.0
  %223 = vmatpush1.msra.mxu0 0.0
  %224 = vmatprep.subr.mxu0 0.0
  %225 = vmatpush1.msra.mxu0 0.0
  %226 = vmatprep.subr.mxu0 0.0
  %227 = vmatpush1.msra.mxu0 0.0
  %228 = vmatprep.subr.mxu0 0.0
  %229 = vmatpush1.msra.mxu0 0.0
  %230 = vmatprep.subr.mxu0 0.0
  %231 = vmatpush1.msra.mxu0 0.0
  %232 = vmatprep.subr.mxu0 0.0
  %233 = vmatpush1.msra.mxu0 0.0
  %234 = vmatprep.subr.mxu0 0.0
  %235 = vmatpush1.msra.mxu0 0.0
  %236 = vmatprep.subr.mxu0 0.0
  %237 = vmatpush1.msra.mxu0 0.0
  %238 = vmatprep.subr.mxu0 0.0
  %239 = vmatpush1.msra.mxu0 0.0
  %240 = vmatprep.subr.mxu0 0.0
  %241 = vmatpush1.msra.mxu0 0.0
  %242 = vmatprep.subr.mxu0 0.0
  %243 = vmatpush1.msra.mxu0 0.0
  %244 = vmatprep.subr.mxu0 0.0
  %245 = vmatpush1.msra.mxu0 0.0
  %246 = vmatprep.subr.mxu0 0.0
  %247 = vmatpush1.msra.mxu0 0.0
  %248 = vmatprep.subr.mxu0 0.0
  %249 = vmatpush1.msra.mxu0 0.0
  %250 = vmatprep.subr.mxu0 0.0
  %251 = vmatpush1.msra.mxu0 0.0
  %252 = vmatprep.subr.mxu0 0.0
  %253 = vmatpush1.msra.mxu0 0.0
  %254 = vmatprep.subr.mxu0 0.0
  %255 = vmatpush1.msra.mxu0 0.0
  %256 = vmatprep.subr.mxu0 0.0
  %257 = vmatpush1.msra.mxu0 0.0
  %258 = vmatprep.mubr.f32.mxu0 0.0
  %259 = vmatmul.mubr.f32.gmra.mrb[0].mxu0 %v99
  %v260 = vpop.f32.mrb[0].mxu0
  %v261 = vadd.f32 %v95, %v260
  %v262 = vpop.f32.mrb[0].mxu0
  %263 = vmatprep.mubr.f32.mxu0 0.0
  %264 = vmatmul.mubr.f32.gmra.mrb[0].mxu0 %v102
  %v265 = vpop.f32.mrb[0].mxu0
  %v266 = vadd.f32 %v95, %v265
  %v267 = vpop.f32.mrb[0].mxu0
  %268 = vmatprep.mubr.f32.mxu0 0.0
  %269 = vmatmul.mubr.f32.gmra.mrb[0].mxu0 %v105
  %v270 = vpop.f32.mrb[0].mxu0
  %v271 = vadd.f32 %v95, %v270
  %v272 = vpop.f32.mrb[0].mxu0
  %273 = vmatprep.mubr.f32.mxu0 0.0
  %274 = vmatmul.mubr.f32.gmra.mrb[0].mxu0 %v108
  %v275 = vpop.f32.mrb[0].mxu0
  %v276 = vadd.f32 %v95, %v275
  %v277 = vpop.f32.mrb[0].mxu0
  %278 = vmatprep.mubr.f32.mxu0 0.0
  %279 = vmatmul.mubr.f32.gmra.mrb[0].mxu0 %v111
  %v280 = vpop.f32.mrb[0].mxu0
  %v281 = vadd.f32 %v95, %v280
  %v282 = vpop.f32.mrb[0].mxu0
  %283 = vmatprep.mubr.f32.mxu0 0.0
  %284 = vmatmul.mubr.f32.gmra.mrb[0].mxu0 %v114
  %v285 = vpop.f32.mrb[0].mxu0
  %v286 = vadd.f32 %v95, %v285
  %v287 = vpop.f32.mrb[0].mxu0
  %288 = vmatprep.mubr.f32.mxu0 0.0
  %289 = vmatmul.mubr.f32.gmra.mrb[0].mxu0 %v117
  %v290 = vpop.f32.mrb[0].mxu0
  %v291 = vadd.f32 %v95, %v290
  %v292 = vpop.f32.mrb[0].mxu0
  %293 = vmatprep.mubr.f32.mxu0 0.0
  %294 = vmatmul.mubr.f32.gmra.mrb[0].mxu0 %v120
  %v295 = vpop.f32.mrb[0].mxu0
  %v296 = vadd.f32 %v95, %v295
  %v297 = vpop.f32.mrb[0].mxu0
  %298 = vmatprep.mubr.f32.mxu0 0.0
  %299 = vmatmul.mubr.f32.gmra.mrb[0].mxu0 %v123
  %v300 = vpop.f32.mrb[0].mxu0
  %v301 = vadd.f32 %v95, %v300
  %v302 = vpop.f32.mrb[0].mxu0
  %303 = vmatprep.mubr.f32.mxu0 0.0
  %304 = vmatmul.mubr.f32.gmra.mrb[0].mxu0 %v126
  %v305 = vpop.f32.mrb[0].mxu0
  %v306 = vadd.f32 %v95, %v305
  %v307 = vpop.f32.mrb[0].mxu0
  %308 = vmatprep.mubr.f32.mxu0 0.0
  %309 = vmatmul.mubr.f32.gmra.mrb[0].mxu0 %v129
  %v310 = vpop.f32.mrb[0].mxu0
  %v311 = vadd.f32 %v95, %v310
  %v312 = vpop.f32.mrb[0].mxu0
  %313 = vmatprep.mubr.f32.mxu0 0.0
  %314 = vmatmul.mubr.f32.gmra.mrb[0].mxu0 %v132
  %v315 = vpop.f32.mrb[0].mxu0
  %v316 = vadd.f32 %v95, %v315
  %v317 = vpop.f32.mrb[0].mxu0
  %318 = vmatprep.mubr.f32.mxu0 0.0
  %319 = vmatmul.mubr.f32.gmra.mrb[0].mxu0 %v135
  %v320 = vpop.f32.mrb[0].mxu0
  %v321 = vadd.f32 %v95, %v320
  %v322 = vpop.f32.mrb[0].mxu0
  %323 = vmatprep.mubr.f32.mxu0 0.0
  %324 = vmatmul.mubr.f32.gmra.mrb[0].mxu0 %v138
  %v325 = vpop.f32.mrb[0].mxu0
  %v326 = vadd.f32 %v95, %v325
  %v327 = vpop.f32.mrb[0].mxu0
  %328 = vmatprep.mubr.f32.mxu0 0.0
  %329 = vmatmul.mubr.f32.gmra.mrb[0].mxu0 %v141
  %v330 = vpop.f32.mrb[0].mxu0
  %v331 = vadd.f32 %v95, %v330
  %v332 = vpop.f32.mrb[0].mxu0
  %333 = vmatprep.mubr.f32.mxu0 0.0
  %334 = vmatmul.mubr.f32.gmra.mrb[0].mxu0 %v144
  %v335 = vpop.f32.mrb[0].mxu0
  %v336 = vadd.f32 %v95, %v335
  %v337 = vpop.f32.mrb[0].mxu0
  %338 = vmatprep.mubr.f32.mxu0 0.0
  %339 = vmatmul.mubr.f32.gmra.mrb[0].mxu0 %v147
  %v340 = vpop.f32.mrb[0].mxu0
  %v341 = vadd.f32 %v95, %v340
  %v342 = vpop.f32.mrb[0].mxu0
  %343 = vmatprep.mubr.f32.mxu0 0.0
  %344 = vmatmul.mubr.f32.gmra.mrb[0].mxu0 %v150
  %v345 = vpop.f32.mrb[0].mxu0
  %v346 = vadd.f32 %v95, %v345
  %v347 = vpop.f32.mrb[0].mxu0
  %348 = vmatprep.mubr.f32.mxu0 0.0
  %349 = vmatmul.mubr.f32.gmra.mrb[0].mxu0 %v153
  %v350 = vpop.f32.mrb[0].mxu0
  %v351 = vadd.f32 %v95, %v350
  %v352 = vpop.f32.mrb[0].mxu0
  %353 = vmatprep.mubr.f32.mxu0 0.0
  %354 = vmatmul.mubr.f32.gmra.mrb[0].mxu0 %v156
  %v355 = vpop.f32.mrb[0].mxu0
  %v356 = vadd.f32 %v95, %v355
  %v357 = vpop.f32.mrb[0].mxu0
  %358 = vmatprep.mubr.f32.mxu0 0.0
  %359 = vmatmul.mubr.f32.gmra.mrb[0].mxu0 %v159
  %v360 = vpop.f32.mrb[0].mxu0
  %v361 = vadd.f32 %v95, %v360
  %v362 = vpop.f32.mrb[0].mxu0
  %363 = vmatprep.mubr.f32.mxu0 0.0
  %364 = vmatmul.mubr.f32.gmra.mrb[0].mxu0 %v162
  %v365 = vpop.f32.mrb[0].mxu0
  %v366 = vadd.f32 %v95, %v365
  %v367 = vpop.f32.mrb[0].mxu0
  %368 = vmatprep.mubr.f32.mxu0 0.0
  %369 = vmatmul.mubr.f32.gmra.mrb[0].mxu0 %v165
  %v370 = vpop.f32.mrb[0].mxu0
  %v371 = vadd.f32 %v95, %v370
  %v372 = vpop.f32.mrb[0].mxu0
  %373 = vmatprep.mubr.f32.mxu0 0.0
  %374 = vmatmul.mubr.f32.gmra.mrb[0].mxu0 %v168
  %v375 = vpop.f32.mrb[0].mxu0
  %v376 = vadd.f32 %v95, %v375
  %v377 = vpop.f32.mrb[0].mxu0
  %378 = vmatprep.mubr.f32.mxu0 0.0
  %379 = vmatmul.mubr.f32.gmra.mrb[0].mxu0 %v171
  %v380 = vpop.f32.mrb[0].mxu0
  %v381 = vadd.f32 %v95, %v380
  %v382 = vpop.f32.mrb[0].mxu0
  %383 = vmatprep.mubr.f32.mxu0 0.0
  %384 = vmatmul.mubr.f32.gmra.mrb[0].mxu0 %v174
  %v385 = vpop.f32.mrb[0].mxu0
  %v386 = vadd.f32 %v95, %v385
  %v387 = vpop.f32.mrb[0].mxu0
  %388 = vmatprep.mubr.f32.mxu0 0.0
  %389 = vmatmul.mubr.f32.gmra.mrb[0].mxu0 %v177
  %v390 = vpop.f32.mrb[0].mxu0
  %v391 = vadd.f32 %v95, %v390
  %v392 = vpop.f32.mrb[0].mxu0
  %393 = vmatprep.mubr.f32.mxu0 0.0
  %394 = vmatmul.mubr.f32.gmra.mrb[0].mxu0 %v180
  %v395 = vpop.f32.mrb[0].mxu0
  %v396 = vadd.f32 %v95, %v395
  %v397 = vpop.f32.mrb[0].mxu0
  %398 = vmatprep.mubr.f32.mxu0 0.0
  %399 = vmatmul.mubr.f32.gmra.mrb[0].mxu0 %v183
  %v400 = vpop.f32.mrb[0].mxu0
  %v401 = vadd.f32 %v95, %v400
  %v402 = vpop.f32.mrb[0].mxu0
  %403 = vmatprep.mubr.f32.mxu0 0.0
  %404 = vmatmul.mubr.f32.gmra.mrb[0].mxu0 %v186
  %v405 = vpop.f32.mrb[0].mxu0
  %v406 = vadd.f32 %v95, %v405
  %v407 = vpop.f32.mrb[0].mxu0
  %408 = vmatprep.mubr.f32.mxu0 0.0
  %409 = vmatmul.mubr.f32.gmra.mrb[0].mxu0 %v189
  %v410 = vpop.f32.mrb[0].mxu0
  %v411 = vadd.f32 %v95, %v410
  %v412 = vpop.f32.mrb[0].mxu0
  %413 = vmatprep.mubr.f32.mxu0 0.0
  %414 = vmatmul.mubr.f32.gmra.mrb[0].mxu0 %v192
  %v415 = vpop.f32.mrb[0].mxu0
  %v416 = vadd.f32 %v95, %v415
  %v417 = vpop.f32.mrb[0].mxu0
  %418 = vdwg.mxu0
  %vm419 = vcmask 261120
  %v420 = vsel %vm419, %v261, 0.0
  %v421 = vsel %vm419, %v266, 0.0
  %v422 = vadd.f32 %v420, %v421
  %v423 = vsel %vm419, %v271, 0.0
  %v424 = vadd.f32 %v422, %v423
  %v425 = vsel %vm419, %v276, 0.0
  %v426 = vadd.f32 %v424, %v425
  %v427 = vsel %vm419, %v281, 0.0
  %v428 = vadd.f32 %v426, %v427
  %v429 = vsel %vm419, %v286, 0.0
  %v430 = vadd.f32 %v428, %v429
  %v431 = vsel %vm419, %v291, 0.0
  %v432 = vadd.f32 %v430, %v431
  %v433 = vsel %vm419, %v296, 0.0
  %v434 = vadd.f32 %v432, %v433
  %v435 = vsel %vm419, %v301, 0.0
  %v436 = vadd.f32 %v434, %v435
  %v437 = vsel %vm419, %v306, 0.0
  %v438 = vadd.f32 %v436, %v437
  %v439 = vsel %vm419, %v311, 0.0
  %v440 = vadd.f32 %v438, %v439
  %v441 = vsel %vm419, %v316, 0.0
  %v442 = vadd.f32 %v440, %v441
  %v443 = vsel %vm419, %v321, 0.0
  %v444 = vadd.f32 %v442, %v443
  %v445 = vsel %vm419, %v326, 0.0
  %v446 = vadd.f32 %v444, %v445
  %v447 = vsel %vm419, %v331, 0.0
  %v448 = vadd.f32 %v446, %v447
  %v449 = vsel %vm419, %v336, 0.0
  %v450 = vadd.f32 %v448, %v449
  %v451 = vsel %vm419, %v341, 0.0
  %v452 = vadd.f32 %v450, %v451
  %v453 = vsel %vm419, %v346, 0.0
  %v454 = vadd.f32 %v452, %v453
  %v455 = vsel %vm419, %v351, 0.0
  %v456 = vadd.f32 %v454, %v455
  %v457 = vsel %vm419, %v356, 0.0
  %v458 = vadd.f32 %v456, %v457
  %v459 = vsel %vm419, %v361, 0.0
  %v460 = vadd.f32 %v458, %v459
  %v461 = vsel %vm419, %v366, 0.0
  %v462 = vadd.f32 %v460, %v461
  %v463 = vsel %vm419, %v371, 0.0
  %v464 = vadd.f32 %v462, %v463
  %v465 = vsel %vm419, %v376, 0.0
  %v466 = vadd.f32 %v464, %v465
  %v467 = vsel %vm419, %v381, 0.0
  %v468 = vadd.f32 %v466, %v467
  %v469 = vsel %vm419, %v386, 0.0
  %v470 = vadd.f32 %v468, %v469
  %v471 = vsel %vm419, %v391, 0.0
  %v472 = vadd.f32 %v470, %v471
  %v473 = vsel %vm419, %v396, 0.0
  %v474 = vadd.f32 %v472, %v473
  %v475 = vsel %vm419, %v401, 0.0
  %v476 = vadd.f32 %v474, %v475
  %v477 = vsel %vm419, %v406, 0.0
  %v478 = vadd.f32 %v476, %v477
  %v479 = vsel %vm419, %v411, 0.0
  %v480 = vadd.f32 %v478, %v479
  %v481 = vsel %vm419, %v416, 0.0
  %v482 = vadd.f32 %v480, %v481
  %v483 = vrot.slane %v482, 4
  %v484 = vadd.f32 %v482, %v483
  %v485 = vrot.slane %v484, 2
  %v486 = vadd.f32 %v484, %v485
  %v487 = vrot.slane %v486, 1
  %v488 = vadd.f32 %v486, %v487
  %v489 = vrcp.pop 256.0
  %v490 = vmul.f32 %v488, %v489
  %v491 = vsub.f32 %v261, %v490
  %v492 = vsub.f32 %v266, %v490
  %v493 = vsub.f32 %v271, %v490
  %v494 = vsub.f32 %v276, %v490
  %v495 = vsub.f32 %v281, %v490
  %v496 = vsub.f32 %v286, %v490
  %v497 = vsub.f32 %v291, %v490
  %v498 = vsub.f32 %v296, %v490
  %v499 = vsub.f32 %v301, %v490
  %v500 = vsub.f32 %v306, %v490
  %v501 = vsub.f32 %v311, %v490
  %v502 = vsub.f32 %v316, %v490
  %v503 = vsub.f32 %v321, %v490
  %v504 = vsub.f32 %v326, %v490
  %v505 = vsub.f32 %v331, %v490
  %v506 = vsub.f32 %v336, %v490
  %v507 = vsub.f32 %v341, %v490
  %v508 = vsub.f32 %v346, %v490
  %v509 = vsub.f32 %v351, %v490
  %v510 = vsub.f32 %v356, %v490
  %v511 = vsub.f32 %v361, %v490
  %v512 = vsub.f32 %v366, %v490
  %v513 = vsub.f32 %v371, %v490
  %v514 = vsub.f32 %v376, %v490
  %v515 = vsub.f32 %v381, %v490
  %v516 = vsub.f32 %v386, %v490
  %v517 = vsub.f32 %v391, %v490
  %v518 = vsub.f32 %v396, %v490
  %v519 = vsub.f32 %v401, %v490
  %v520 = vsub.f32 %v406, %v490
  %v521 = vsub.f32 %v411, %v490
  %v522 = vsub.f32 %v416, %v490
  %v523 = vmul.f32 %v491, %v491
  %v524 = vmul.f32 %v492, %v492
  %v525 = vmul.f32 %v493, %v493
  %v526 = vmul.f32 %v494, %v494
  %v527 = vmul.f32 %v495, %v495
  %v528 = vmul.f32 %v496, %v496
  %v529 = vmul.f32 %v497, %v497
  %v530 = vmul.f32 %v498, %v498
  %v531 = vmul.f32 %v499, %v499
  %v532 = vmul.f32 %v500, %v500
  %v533 = vmul.f32 %v501, %v501
  %v534 = vmul.f32 %v502, %v502
  %v535 = vmul.f32 %v503, %v503
  %v536 = vmul.f32 %v504, %v504
  %v537 = vmul.f32 %v505, %v505
  %v538 = vmul.f32 %v506, %v506
  %v539 = vmul.f32 %v507, %v507
  %v540 = vmul.f32 %v508, %v508
  %v541 = vmul.f32 %v509, %v509
  %v542 = vmul.f32 %v510, %v510
  %v543 = vmul.f32 %v511, %v511
  %v544 = vmul.f32 %v512, %v512
  %v545 = vmul.f32 %v513, %v513
  %v546 = vmul.f32 %v514, %v514
  %v547 = vmul.f32 %v515, %v515
  %v548 = vmul.f32 %v516, %v516
  %v549 = vmul.f32 %v517, %v517
  %v550 = vmul.f32 %v518, %v518
  %v551 = vmul.f32 %v519, %v519
  %v552 = vmul.f32 %v520, %v520
  %v553 = vmul.f32 %v521, %v521
  %v554 = vmul.f32 %v522, %v522
  %v555 = vsel %vm419, %v523, 0.0
  %v556 = vsel %vm419, %v524, 0.0
  %v557 = vadd.f32 %v555, %v556
  %v558 = vsel %vm419, %v525, 0.0
  %v559 = vadd.f32 %v557, %v558
  %v560 = vsel %vm419, %v526, 0.0
  %v561 = vadd.f32 %v559, %v560
  %v562 = vsel %vm419, %v527, 0.0
  %v563 = vadd.f32 %v561, %v562
  %v564 = vsel %vm419, %v528, 0.0
  %v565 = vadd.f32 %v563, %v564
  %v566 = vsel %vm419, %v529, 0.0
  %v567 = vadd.f32 %v565, %v566
  %v568 = vsel %vm419, %v530, 0.0
  %v569 = vadd.f32 %v567, %v568
  %v570 = vsel %vm419, %v531, 0.0
  %v571 = vadd.f32 %v569, %v570
  %v572 = vsel %vm419, %v532, 0.0
  %v573 = vadd.f32 %v571, %v572
  %v574 = vsel %vm419, %v533, 0.0
  %v575 = vadd.f32 %v573, %v574
  %v576 = vsel %vm419, %v534, 0.0
  %v577 = vadd.f32 %v575, %v576
  %v578 = vsel %vm419, %v535, 0.0
  %v579 = vadd.f32 %v577, %v578
  %v580 = vsel %vm419, %v536, 0.0
  %v581 = vadd.f32 %v579, %v580
  %v582 = vsel %vm419, %v537, 0.0
  %v583 = vadd.f32 %v581, %v582
  %v584 = vsel %vm419, %v538, 0.0
  %v585 = vadd.f32 %v583, %v584
  %v586 = vsel %vm419, %v539, 0.0
  %v587 = vadd.f32 %v585, %v586
  %v588 = vsel %vm419, %v540, 0.0
  %v589 = vadd.f32 %v587, %v588
  %v590 = vsel %vm419, %v541, 0.0
  %v591 = vadd.f32 %v589, %v590
  %v592 = vsel %vm419, %v542, 0.0
  %v593 = vadd.f32 %v591, %v592
  %v594 = vsel %vm419, %v543, 0.0
  %v595 = vadd.f32 %v593, %v594
  %v596 = vsel %vm419, %v544, 0.0
  %v597 = vadd.f32 %v595, %v596
  %v598 = vsel %vm419, %v545, 0.0
  %v599 = vadd.f32 %v597, %v598
  %v600 = vsel %vm419, %v546, 0.0
  %v601 = vadd.f32 %v599, %v600
  %v602 = vsel %vm419, %v547, 0.0
  %v603 = vadd.f32 %v601, %v602
  %v604 = vsel %vm419, %v548, 0.0
  %v605 = vadd.f32 %v603, %v604
  %v606 = vsel %vm419, %v549, 0.0
  %v607 = vadd.f32 %v605, %v606
  %v608 = vsel %vm419, %v550, 0.0
  %v609 = vadd.f32 %v607, %v608
  %v610 = vsel %vm419, %v551, 0.0
  %v611 = vadd.f32 %v609, %v610
  %v612 = vsel %vm419, %v552, 0.0
  %v613 = vadd.f32 %v611, %v612
  %v614 = vsel %vm419, %v553, 0.0
  %v615 = vadd.f32 %v613, %v614
  %v616 = vsel %vm419, %v554, 0.0
  %v617 = vadd.f32 %v615, %v616
  %v618 = vrot.slane %v617, 4
  %v619 = vadd.f32 %v617, %v618
  %v620 = vrot.slane %v619, 2
  %v621 = vadd.f32 %v619, %v620
  %v622 = vrot.slane %v621, 1
  %v623 = vadd.f32 %v621, %v622
  %v624 = vmul.f32 %v623, %v489
  %v625 = vld [vmem:[%s3] sm:$0x1]
  %v626 = vadd.f32 %v624, 1e-05
  %v627 = vrsqrt.pop %v626
  %v628 = vmul.f32 %v625, %v627
  %v630 = vlaneseq
  %v631 = vshrl.u32 %v630, 7
  %v632 = vsub.s32 0, %v631
  %v633 = vrot.slane %v628, %v632
  %v635 = vmul.f32 %v491, %v633
  %v636 = vmul.f32 %v492, %v633
  %v637 = vmul.f32 %v493, %v633
  %v638 = vmul.f32 %v494, %v633
  %v639 = vmul.f32 %v495, %v633
  %v640 = vmul.f32 %v496, %v633
  %v641 = vmul.f32 %v497, %v633
  %v642 = vmul.f32 %v498, %v633
  %v643 = vmul.f32 %v499, %v633
  %v644 = vmul.f32 %v500, %v633
  %v645 = vmul.f32 %v501, %v633
  %v646 = vmul.f32 %v502, %v633
  %v647 = vmul.f32 %v503, %v633
  %v648 = vmul.f32 %v504, %v633
  %v649 = vmul.f32 %v505, %v633
  %v650 = vmul.f32 %v506, %v633
  %v651 = vmul.f32 %v507, %v633
  %v652 = vmul.f32 %v508, %v633
  %v653 = vmul.f32 %v509, %v633
  %v654 = vmul.f32 %v510, %v633
  %v655 = vmul.f32 %v511, %v633
  %v656 = vmul.f32 %v512, %v633
  %v657 = vmul.f32 %v513, %v633
  %v658 = vmul.f32 %v514, %v633
  %v659 = vmul.f32 %v515, %v633
  %v660 = vmul.f32 %v516, %v633
  %v661 = vmul.f32 %v517, %v633
  %v662 = vmul.f32 %v518, %v633
  %v663 = vmul.f32 %v519, %v633
  %v664 = vmul.f32 %v520, %v633
  %v665 = vmul.f32 %v521, %v633
  %v666 = vmul.f32 %v522, %v633
  %v667 = vld [vmem:[%s4] sm:$0x1]
  %v669 = vlaneseq
  %v670 = vshrl.u32 %v669, 7
  %v671 = vsub.s32 0, %v670
  %v672 = vrot.slane %v667, %v671
  %v674 = vadd.f32 %v635, %v672
  %v675 = vadd.f32 %v636, %v672
  %v676 = vadd.f32 %v637, %v672
  %v677 = vadd.f32 %v638, %v672
  %v678 = vadd.f32 %v639, %v672
  %v679 = vadd.f32 %v640, %v672
  %v680 = vadd.f32 %v641, %v672
  %v681 = vadd.f32 %v642, %v672
  %v682 = vadd.f32 %v643, %v672
  %v683 = vadd.f32 %v644, %v672
  %v684 = vadd.f32 %v645, %v672
  %v685 = vadd.f32 %v646, %v672
  %v686 = vadd.f32 %v647, %v672
  %v687 = vadd.f32 %v648, %v672
  %v688 = vadd.f32 %v649, %v672
  %v689 = vadd.f32 %v650, %v672
  %v690 = vadd.f32 %v651, %v672
  %v691 = vadd.f32 %v652, %v672
  %v692 = vadd.f32 %v653, %v672
  %v693 = vadd.f32 %v654, %v672
  %v694 = vadd.f32 %v655, %v672
  %v695 = vadd.f32 %v656, %v672
  %v696 = vadd.f32 %v657, %v672
  %v697 = vadd.f32 %v658, %v672
  %v698 = vadd.f32 %v659, %v672
  %v699 = vadd.f32 %v660, %v672
  %v700 = vadd.f32 %v661, %v672
  %v701 = vadd.f32 %v662, %v672
  %v702 = vadd.f32 %v663, %v672
  %v703 = vadd.f32 %v664, %v672
  %v704 = vadd.f32 %v665, %v672
  %v705 = vadd.f32 %v666, %v672
  %v706 = vmax.f32 %v674, 0.0
  %v707 = vmax.f32 %v675, 0.0
  %v708 = vmax.f32 %v676, 0.0
  %v709 = vmax.f32 %v677, 0.0
  %v710 = vmax.f32 %v678, 0.0
  %v711 = vmax.f32 %v679, 0.0
  %v712 = vmax.f32 %v680, 0.0
  %v713 = vmax.f32 %v681, 0.0
  %v714 = vmax.f32 %v682, 0.0
  %v715 = vmax.f32 %v683, 0.0
  %v716 = vmax.f32 %v684, 0.0
  %v717 = vmax.f32 %v685, 0.0
  %v718 = vmax.f32 %v686, 0.0
  %v719 = vmax.f32 %v687, 0.0
  %v720 = vmax.f32 %v688, 0.0
  %v721 = vmax.f32 %v689, 0.0
  %v722 = vmax.f32 %v690, 0.0
  %v723 = vmax.f32 %v691, 0.0
  %v724 = vmax.f32 %v692, 0.0
  %v725 = vmax.f32 %v693, 0.0
  %v726 = vmax.f32 %v694, 0.0
  %v727 = vmax.f32 %v695, 0.0
  %v728 = vmax.f32 %v696, 0.0
  %v729 = vmax.f32 %v697, 0.0
  %v730 = vmax.f32 %v698, 0.0
  %v731 = vmax.f32 %v699, 0.0
  %v732 = vmax.f32 %v700, 0.0
  %v733 = vmax.f32 %v701, 0.0
  %v734 = vmax.f32 %v702, 0.0
  %v735 = vmax.f32 %v703, 0.0
  %v736 = vmax.f32 %v704, 0.0
  %v737 = vmax.f32 %v705, 0.0
  %v738 = vld [vmem:[%s5] sm:$0xff]
  %v739 = vld [vmem:[%s5 + $0x8] sm:$0xff]
  %v740 = vld [vmem:[%s5 + $0x10] sm:$0xff]
  %v741 = vld [vmem:[%s5 + $0x18] sm:$0xff]
  %v742 = vld [vmem:[%s6] sm:$0x1]
  %v744 = vlaneseq
  %v745 = vshrl.u32 %v744, 7
  %v746 = vsub.s32 0, %v745
  %v747 = vrot.slane %v742, %v746
  %v750 = vsel %vm419, %v706, 0
  %v753 = vsel %vm419, %v707, 0
  %v756 = vsel %vm419, %v708, 0
  %v759 = vsel %vm419, %v709, 0
  %v762 = vsel %vm419, %v710, 0
  %v765 = vsel %vm419, %v711, 0
  %v768 = vsel %vm419, %v712, 0
  %v771 = vsel %vm419, %v713, 0
  %v774 = vsel %vm419, %v714, 0
  %v777 = vsel %vm419, %v715, 0
  %v780 = vsel %vm419, %v716, 0
  %v783 = vsel %vm419, %v717, 0
  %v786 = vsel %vm419, %v718, 0
  %v789 = vsel %vm419, %v719, 0
  %v792 = vsel %vm419, %v720, 0
  %v795 = vsel %vm419, %v721, 0
  %v798 = vsel %vm419, %v722, 0
  %v801 = vsel %vm419, %v723, 0
  %v804 = vsel %vm419, %v724, 0
  %v807 = vsel %vm419, %v725, 0
  %v810 = vsel %vm419, %v726, 0
  %v813 = vsel %vm419, %v727, 0
  %v816 = vsel %vm419, %v728, 0
  %v819 = vsel %vm419, %v729, 0
  %v822 = vsel %vm419, %v730, 0
  %v825 = vsel %vm419, %v731, 0
  %v828 = vsel %vm419, %v732, 0
  %v831 = vsel %vm419, %v733, 0
  %v834 = vsel %vm419, %v734, 0
  %v837 = vsel %vm419, %v735, 0
  %v840 = vsel %vm419, %v736, 0
  %v843 = vsel %vm419, %v737, 0
  %845 = vmatprep.subr.mxu0 0.0
  %846 = vmatpush1.msra.mxu0 %v738
  %847 = vmatprep.subr.mxu0 0.0
  %848 = vmatpush1.msra.mxu0 %v739
  %849 = vmatprep.subr.mxu0 0.0
  %850 = vmatpush1.msra.mxu0 %v740
  %851 = vmatprep.subr.mxu0 0.0
  %852 = vmatpush1.msra.mxu0 %v741
  %853 = vmatprep.subr.mxu0 0.0
  %854 = vmatpush1.msra.mxu0 0.0
  %855 = vmatprep.subr.mxu0 0.0
  %856 = vmatpush1.msra.mxu0 0.0
  %857 = vmatprep.subr.mxu0 0.0
  %858 = vmatpush1.msra.mxu0 0.0
  %859 = vmatprep.subr.mxu0 0.0
  %860 = vmatpush1.msra.mxu0 0.0
  %861 = vmatprep.subr.mxu0 0.0
  %862 = vmatpush1.msra.mxu0 0.0
  %863 = vmatprep.subr.mxu0 0.0
  %864 = vmatpush1.msra.mxu0 0.0
  %865 = vmatprep.subr.mxu0 0.0
  %866 = vmatpush1.msra.mxu0 0.0
  %867 = vmatprep.subr.mxu0 0.0
  %868 = vmatpush1.msra.mxu0 0.0
  %869 = vmatprep.subr.mxu0 0.0
  %870 = vmatpush1.msra.mxu0 0.0
  %871 = vmatprep.subr.mxu0 0.0
  %872 = vmatpush1.msra.mxu0 0.0
  %873 = vmatprep.subr.mxu0 0.0
  %874 = vmatpush1.msra.mxu0 0.0
  %875 = vmatprep.subr.mxu0 0.0
  %876 = vmatpush1.msra.mxu0 0.0
  %877 = vmatprep.subr.mxu0 0.0
  %878 = vmatpush1.msra.mxu0 0.0
  %879 = vmatprep.subr.mxu0 0.0
  %880 = vmatpush1.msra.mxu0 0.0
  %881 = vmatprep.subr.mxu0 0.0
  %882 = vmatpush1.msra.mxu0 0.0
  %883 = vmatprep.subr.mxu0 0.0
  %884 = vmatpush1.msra.mxu0 0.0
  %885 = vmatprep.subr.mxu0 0.0
  %886 = vmatpush1.msra.mxu0 0.0
  %887 = vmatprep.subr.mxu0 0.0
  %888 = vmatpush1.msra.mxu0 0.0
  %889 = vmatprep.subr.mxu0 0.0
  %890 = vmatpush1.msra.mxu0 0.0
  %891 = vmatprep.subr.mxu0 0.0
  %892 = vmatpush1.msra.mxu0 0.0
  %893 = vmatprep.subr.mxu0 0.0
  %894 = vmatpush1.msra.mxu0 0.0
  %895 = vmatprep.subr.mxu0 0.0
  %896 = vmatpush1.msra.mxu0 0.0
  %897 = vmatprep.subr.mxu0 0.0
  %898 = vmatpush1.msra.mxu0 0.0
  %899 = vmatprep.subr.mxu0 0.0
  %900 = vmatpush1.msra.mxu0 0.0
  %901 = vmatprep.subr.mxu0 0.0
  %902 = vmatpush1.msra.mxu0 0.0
  %903 = vmatprep.subr.mxu0 0.0
  %904 = vmatpush1.msra.mxu0 0.0
  %905 = vmatprep.subr.mxu0 0.0
  %906 = vmatpush1.msra.mxu0 0.0
  %907 = vmatprep.subr.mxu0 0.0
  %908 = vmatpush1.msra.mxu0 0.0
  %909 = vmatprep.mubr.f32.mxu0 0.0
  %910 = vmatmul.mubr.f32.gmra.mrb[0].mxu0 %v750
  %v911 = vpop.f32.mrb[0].mxu0
  %v912 = vadd.f32 %v747, %v911
  %v913 = vpop.f32.mrb[0].mxu0
  %914 = vmatprep.mubr.f32.mxu0 0.0
  %915 = vmatmul.mubr.f32.gmra.mrb[0].mxu0 %v753
  %v916 = vpop.f32.mrb[0].mxu0
  %v917 = vadd.f32 %v747, %v916
  %v918 = vpop.f32.mrb[0].mxu0
  %919 = vmatprep.mubr.f32.mxu0 0.0
  %920 = vmatmul.mubr.f32.gmra.mrb[0].mxu0 %v756
  %v921 = vpop.f32.mrb[0].mxu0
  %v922 = vadd.f32 %v747, %v921
  %v923 = vpop.f32.mrb[0].mxu0
  %924 = vmatprep.mubr.f32.mxu0 0.0
  %925 = vmatmul.mubr.f32.gmra.mrb[0].mxu0 %v759
  %v926 = vpop.f32.mrb[0].mxu0
  %v927 = vadd.f32 %v747, %v926
  %v928 = vpop.f32.mrb[0].mxu0
  %929 = vmatprep.mubr.f32.mxu0 0.0
  %930 = vmatmul.mubr.f32.gmra.mrb[0].mxu0 %v762
  %v931 = vpop.f32.mrb[0].mxu0
  %v932 = vadd.f32 %v747, %v931
  %v933 = vpop.f32.mrb[0].mxu0
  %934 = vmatprep.mubr.f32.mxu0 0.0
  %935 = vmatmul.mubr.f32.gmra.mrb[0].mxu0 %v765
  %v936 = vpop.f32.mrb[0].mxu0
  %v937 = vadd.f32 %v747, %v936
  %v938 = vpop.f32.mrb[0].mxu0
  %939 = vmatprep.mubr.f32.mxu0 0.0
  %940 = vmatmul.mubr.f32.gmra.mrb[0].mxu0 %v768
  %v941 = vpop.f32.mrb[0].mxu0
  %v942 = vadd.f32 %v747, %v941
  %v943 = vpop.f32.mrb[0].mxu0
  %944 = vmatprep.mubr.f32.mxu0 0.0
  %945 = vmatmul.mubr.f32.gmra.mrb[0].mxu0 %v771
  %v946 = vpop.f32.mrb[0].mxu0
  %v947 = vadd.f32 %v747, %v946
  %v948 = vpop.f32.mrb[0].mxu0
  %949 = vmatprep.mubr.f32.mxu0 0.0
  %950 = vmatmul.mubr.f32.gmra.mrb[0].mxu0 %v774
  %v951 = vpop.f32.mrb[0].mxu0
  %v952 = vadd.f32 %v747, %v951
  %v953 = vpop.f32.mrb[0].mxu0
  %954 = vmatprep.mubr.f32.mxu0 0.0
  %955 = vmatmul.mubr.f32.gmra.mrb[0].mxu0 %v777
  %v956 = vpop.f32.mrb[0].mxu0
  %v957 = vadd.f32 %v747, %v956
  %v958 = vpop.f32.mrb[0].mxu0
  %959 = vmatprep.mubr.f32.mxu0 0.0
  %960 = vmatmul.mubr.f32.gmra.mrb[0].mxu0 %v780
  %v961 = vpop.f32.mrb[0].mxu0
  %v962 = vadd.f32 %v747, %v961
  %v963 = vpop.f32.mrb[0].mxu0
  %964 = vmatprep.mubr.f32.mxu0 0.0
  %965 = vmatmul.mubr.f32.gmra.mrb[0].mxu0 %v783
  %v966 = vpop.f32.mrb[0].mxu0
  %v967 = vadd.f32 %v747, %v966
  %v968 = vpop.f32.mrb[0].mxu0
  %969 = vmatprep.mubr.f32.mxu0 0.0
  %970 = vmatmul.mubr.f32.gmra.mrb[0].mxu0 %v786
  %v971 = vpop.f32.mrb[0].mxu0
  %v972 = vadd.f32 %v747, %v971
  %v973 = vpop.f32.mrb[0].mxu0
  %974 = vmatprep.mubr.f32.mxu0 0.0
  %975 = vmatmul.mubr.f32.gmra.mrb[0].mxu0 %v789
  %v976 = vpop.f32.mrb[0].mxu0
  %v977 = vadd.f32 %v747, %v976
  %v978 = vpop.f32.mrb[0].mxu0
  %979 = vmatprep.mubr.f32.mxu0 0.0
  %980 = vmatmul.mubr.f32.gmra.mrb[0].mxu0 %v792
  %v981 = vpop.f32.mrb[0].mxu0
  %v982 = vadd.f32 %v747, %v981
  %v983 = vpop.f32.mrb[0].mxu0
  %984 = vmatprep.mubr.f32.mxu0 0.0
  %985 = vmatmul.mubr.f32.gmra.mrb[0].mxu0 %v795
  %v986 = vpop.f32.mrb[0].mxu0
  %v987 = vadd.f32 %v747, %v986
  %v988 = vpop.f32.mrb[0].mxu0
  %989 = vmatprep.mubr.f32.mxu0 0.0
  %990 = vmatmul.mubr.f32.gmra.mrb[0].mxu0 %v798
  %v991 = vpop.f32.mrb[0].mxu0
  %v992 = vadd.f32 %v747, %v991
  %v993 = vpop.f32.mrb[0].mxu0
  %994 = vmatprep.mubr.f32.mxu0 0.0
  %995 = vmatmul.mubr.f32.gmra.mrb[0].mxu0 %v801
  %v996 = vpop.f32.mrb[0].mxu0
  %v997 = vadd.f32 %v747, %v996
  %v998 = vpop.f32.mrb[0].mxu0
  %999 = vmatprep.mubr.f32.mxu0 0.0
  %1000 = vmatmul.mubr.f32.gmra.mrb[0].mxu0 %v804
  %v1001 = vpop.f32.mrb[0].mxu0
  %v1002 = vadd.f32 %v747, %v1001
  %v1003 = vpop.f32.mrb[0].mxu0
  %1004 = vmatprep.mubr.f32.mxu0 0.0
  %1005 = vmatmul.mubr.f32.gmra.mrb[0].mxu0 %v807
  %v1006 = vpop.f32.mrb[0].mxu0
  %v1007 = vadd.f32 %v747, %v1006
  %v1008 = vpop.f32.mrb[0].mxu0
  %1009 = vmatprep.mubr.f32.mxu0 0.0
  %1010 = vmatmul.mubr.f32.gmra.mrb[0].mxu0 %v810
  %v1011 = vpop.f32.mrb[0].mxu0
  %v1012 = vadd.f32 %v747, %v1011
  %v1013 = vpop.f32.mrb[0].mxu0
  %1014 = vmatprep.mubr.f32.mxu0 0.0
  %1015 = vmatmul.mubr.f32.gmra.mrb[0].mxu0 %v813
  %v1016 = vpop.f32.mrb[0].mxu0
  %v1017 = vadd.f32 %v747, %v1016
  %v1018 = vpop.f32.mrb[0].mxu0
  %1019 = vmatprep.mubr.f32.mxu0 0.0
  %1020 = vmatmul.mubr.f32.gmra.mrb[0].mxu0 %v816
  %v1021 = vpop.f32.mrb[0].mxu0
  %v1022 = vadd.f32 %v747, %v1021
  %v1023 = vpop.f32.mrb[0].mxu0
  %1024 = vmatprep.mubr.f32.mxu0 0.0
  %1025 = vmatmul.mubr.f32.gmra.mrb[0].mxu0 %v819
  %v1026 = vpop.f32.mrb[0].mxu0
  %v1027 = vadd.f32 %v747, %v1026
  %v1028 = vpop.f32.mrb[0].mxu0
  %1029 = vmatprep.mubr.f32.mxu0 0.0
  %1030 = vmatmul.mubr.f32.gmra.mrb[0].mxu0 %v822
  %v1031 = vpop.f32.mrb[0].mxu0
  %v1032 = vadd.f32 %v747, %v1031
  %v1033 = vpop.f32.mrb[0].mxu0
  %1034 = vmatprep.mubr.f32.mxu0 0.0
  %1035 = vmatmul.mubr.f32.gmra.mrb[0].mxu0 %v825
  %v1036 = vpop.f32.mrb[0].mxu0
  %v1037 = vadd.f32 %v747, %v1036
  %v1038 = vpop.f32.mrb[0].mxu0
  %1039 = vmatprep.mubr.f32.mxu0 0.0
  %1040 = vmatmul.mubr.f32.gmra.mrb[0].mxu0 %v828
  %v1041 = vpop.f32.mrb[0].mxu0
  %v1042 = vadd.f32 %v747, %v1041
  %v1043 = vpop.f32.mrb[0].mxu0
  %1044 = vmatprep.mubr.f32.mxu0 0.0
  %1045 = vmatmul.mubr.f32.gmra.mrb[0].mxu0 %v831
  %v1046 = vpop.f32.mrb[0].mxu0
  %v1047 = vadd.f32 %v747, %v1046
  %v1048 = vpop.f32.mrb[0].mxu0
  %1049 = vmatprep.mubr.f32.mxu0 0.0
  %1050 = vmatmul.mubr.f32.gmra.mrb[0].mxu0 %v834
  %v1051 = vpop.f32.mrb[0].mxu0
  %v1052 = vadd.f32 %v747, %v1051
  %v1053 = vpop.f32.mrb[0].mxu0
  %1054 = vmatprep.mubr.f32.mxu0 0.0
  %1055 = vmatmul.mubr.f32.gmra.mrb[0].mxu0 %v837
  %v1056 = vpop.f32.mrb[0].mxu0
  %v1057 = vadd.f32 %v747, %v1056
  %v1058 = vpop.f32.mrb[0].mxu0
  %1059 = vmatprep.mubr.f32.mxu0 0.0
  %1060 = vmatmul.mubr.f32.gmra.mrb[0].mxu0 %v840
  %v1061 = vpop.f32.mrb[0].mxu0
  %v1062 = vadd.f32 %v747, %v1061
  %v1063 = vpop.f32.mrb[0].mxu0
  %1064 = vmatprep.mubr.f32.mxu0 0.0
  %1065 = vmatmul.mubr.f32.gmra.mrb[0].mxu0 %v843
  %v1066 = vpop.f32.mrb[0].mxu0
  %v1067 = vadd.f32 %v747, %v1066
  %v1068 = vpop.f32.mrb[0].mxu0
  %1069 = vdwg.mxu0
  %vm1070 = vcmask 130048
  %v1071 = vsel %vm1070, %v912, 0.0
  %v1072 = vsel %vm1070, %v917, 0.0
  %v1073 = vadd.f32 %v1071, %v1072
  %v1074 = vsel %vm1070, %v922, 0.0
  %v1075 = vadd.f32 %v1073, %v1074
  %v1076 = vsel %vm1070, %v927, 0.0
  %v1077 = vadd.f32 %v1075, %v1076
  %v1078 = vsel %vm1070, %v932, 0.0
  %v1079 = vadd.f32 %v1077, %v1078
  %v1080 = vsel %vm1070, %v937, 0.0
  %v1081 = vadd.f32 %v1079, %v1080
  %v1082 = vsel %vm1070, %v942, 0.0
  %v1083 = vadd.f32 %v1081, %v1082
  %v1084 = vsel %vm1070, %v947, 0.0
  %v1085 = vadd.f32 %v1083, %v1084
  %v1086 = vsel %vm1070, %v952, 0.0
  %v1087 = vadd.f32 %v1085, %v1086
  %v1088 = vsel %vm1070, %v957, 0.0
  %v1089 = vadd.f32 %v1087, %v1088
  %v1090 = vsel %vm1070, %v962, 0.0
  %v1091 = vadd.f32 %v1089, %v1090
  %v1092 = vsel %vm1070, %v967, 0.0
  %v1093 = vadd.f32 %v1091, %v1092
  %v1094 = vsel %vm1070, %v972, 0.0
  %v1095 = vadd.f32 %v1093, %v1094
  %v1096 = vsel %vm1070, %v977, 0.0
  %v1097 = vadd.f32 %v1095, %v1096
  %v1098 = vsel %vm1070, %v982, 0.0
  %v1099 = vadd.f32 %v1097, %v1098
  %v1100 = vsel %vm1070, %v987, 0.0
  %v1101 = vadd.f32 %v1099, %v1100
  %v1102 = vsel %vm1070, %v992, 0.0
  %v1103 = vadd.f32 %v1101, %v1102
  %v1104 = vsel %vm1070, %v997, 0.0
  %v1105 = vadd.f32 %v1103, %v1104
  %v1106 = vsel %vm1070, %v1002, 0.0
  %v1107 = vadd.f32 %v1105, %v1106
  %v1108 = vsel %vm1070, %v1007, 0.0
  %v1109 = vadd.f32 %v1107, %v1108
  %v1110 = vsel %vm1070, %v1012, 0.0
  %v1111 = vadd.f32 %v1109, %v1110
  %v1112 = vsel %vm1070, %v1017, 0.0
  %v1113 = vadd.f32 %v1111, %v1112
  %v1114 = vsel %vm1070, %v1022, 0.0
  %v1115 = vadd.f32 %v1113, %v1114
  %v1116 = vsel %vm1070, %v1027, 0.0
  %v1117 = vadd.f32 %v1115, %v1116
  %v1118 = vsel %vm1070, %v1032, 0.0
  %v1119 = vadd.f32 %v1117, %v1118
  %v1120 = vsel %vm1070, %v1037, 0.0
  %v1121 = vadd.f32 %v1119, %v1120
  %v1122 = vsel %vm1070, %v1042, 0.0
  %v1123 = vadd.f32 %v1121, %v1122
  %v1124 = vsel %vm1070, %v1047, 0.0
  %v1125 = vadd.f32 %v1123, %v1124
  %v1126 = vsel %vm1070, %v1052, 0.0
  %v1127 = vadd.f32 %v1125, %v1126
  %v1128 = vsel %vm1070, %v1057, 0.0
  %v1129 = vadd.f32 %v1127, %v1128
  %v1130 = vsel %vm1070, %v1062, 0.0
  %v1131 = vadd.f32 %v1129, %v1130
  %v1132 = vsel %vm1070, %v1067, 0.0
  %v1133 = vadd.f32 %v1131, %v1132
  %v1134 = vrot.slane %v1133, 4
  %v1135 = vadd.f32 %v1133, %v1134
  %v1136 = vrot.slane %v1135, 2
  %v1137 = vadd.f32 %v1135, %v1136
  %v1138 = vrot.slane %v1137, 1
  %v1139 = vadd.f32 %v1137, %v1138
  %v1140 = vmul.f32 %v1139, %v489
  %v1141 = vsub.f32 %v912, %v1140
  %v1142 = vsub.f32 %v917, %v1140
  %v1143 = vsub.f32 %v922, %v1140
  %v1144 = vsub.f32 %v927, %v1140
  %v1145 = vsub.f32 %v932, %v1140
  %v1146 = vsub.f32 %v937, %v1140
  %v1147 = vsub.f32 %v942, %v1140
  %v1148 = vsub.f32 %v947, %v1140
  %v1149 = vsub.f32 %v952, %v1140
  %v1150 = vsub.f32 %v957, %v1140
  %v1151 = vsub.f32 %v962, %v1140
  %v1152 = vsub.f32 %v967, %v1140
  %v1153 = vsub.f32 %v972, %v1140
  %v1154 = vsub.f32 %v977, %v1140
  %v1155 = vsub.f32 %v982, %v1140
  %v1156 = vsub.f32 %v987, %v1140
  %v1157 = vsub.f32 %v992, %v1140
  %v1158 = vsub.f32 %v997, %v1140
  %v1159 = vsub.f32 %v1002, %v1140
  %v1160 = vsub.f32 %v1007, %v1140
  %v1161 = vsub.f32 %v1012, %v1140
  %v1162 = vsub.f32 %v1017, %v1140
  %v1163 = vsub.f32 %v1022, %v1140
  %v1164 = vsub.f32 %v1027, %v1140
  %v1165 = vsub.f32 %v1032, %v1140
  %v1166 = vsub.f32 %v1037, %v1140
  %v1167 = vsub.f32 %v1042, %v1140
  %v1168 = vsub.f32 %v1047, %v1140
  %v1169 = vsub.f32 %v1052, %v1140
  %v1170 = vsub.f32 %v1057, %v1140
  %v1171 = vsub.f32 %v1062, %v1140
  %v1172 = vsub.f32 %v1067, %v1140
  %v1173 = vmul.f32 %v1141, %v1141
  %v1174 = vmul.f32 %v1142, %v1142
  %v1175 = vmul.f32 %v1143, %v1143
  %v1176 = vmul.f32 %v1144, %v1144
  %v1177 = vmul.f32 %v1145, %v1145
  %v1178 = vmul.f32 %v1146, %v1146
  %v1179 = vmul.f32 %v1147, %v1147
  %v1180 = vmul.f32 %v1148, %v1148
  %v1181 = vmul.f32 %v1149, %v1149
  %v1182 = vmul.f32 %v1150, %v1150
  %v1183 = vmul.f32 %v1151, %v1151
  %v1184 = vmul.f32 %v1152, %v1152
  %v1185 = vmul.f32 %v1153, %v1153
  %v1186 = vmul.f32 %v1154, %v1154
  %v1187 = vmul.f32 %v1155, %v1155
  %v1188 = vmul.f32 %v1156, %v1156
  %v1189 = vmul.f32 %v1157, %v1157
  %v1190 = vmul.f32 %v1158, %v1158
  %v1191 = vmul.f32 %v1159, %v1159
  %v1192 = vmul.f32 %v1160, %v1160
  %v1193 = vmul.f32 %v1161, %v1161
  %v1194 = vmul.f32 %v1162, %v1162
  %v1195 = vmul.f32 %v1163, %v1163
  %v1196 = vmul.f32 %v1164, %v1164
  %v1197 = vmul.f32 %v1165, %v1165
  %v1198 = vmul.f32 %v1166, %v1166
  %v1199 = vmul.f32 %v1167, %v1167
  %v1200 = vmul.f32 %v1168, %v1168
  %v1201 = vmul.f32 %v1169, %v1169
  %v1202 = vmul.f32 %v1170, %v1170
  %v1203 = vmul.f32 %v1171, %v1171
  %v1204 = vmul.f32 %v1172, %v1172
  %v1205 = vsel %vm1070, %v1173, 0.0
  %v1206 = vsel %vm1070, %v1174, 0.0
  %v1207 = vadd.f32 %v1205, %v1206
  %v1208 = vsel %vm1070, %v1175, 0.0
  %v1209 = vadd.f32 %v1207, %v1208
  %v1210 = vsel %vm1070, %v1176, 0.0
  %v1211 = vadd.f32 %v1209, %v1210
  %v1212 = vsel %vm1070, %v1177, 0.0
  %v1213 = vadd.f32 %v1211, %v1212
  %v1214 = vsel %vm1070, %v1178, 0.0
  %v1215 = vadd.f32 %v1213, %v1214
  %v1216 = vsel %vm1070, %v1179, 0.0
  %v1217 = vadd.f32 %v1215, %v1216
  %v1218 = vsel %vm1070, %v1180, 0.0
  %v1219 = vadd.f32 %v1217, %v1218
  %v1220 = vsel %vm1070, %v1181, 0.0
  %v1221 = vadd.f32 %v1219, %v1220
  %v1222 = vsel %vm1070, %v1182, 0.0
  %v1223 = vadd.f32 %v1221, %v1222
  %v1224 = vsel %vm1070, %v1183, 0.0
  %v1225 = vadd.f32 %v1223, %v1224
  %v1226 = vsel %vm1070, %v1184, 0.0
  %v1227 = vadd.f32 %v1225, %v1226
  %v1228 = vsel %vm1070, %v1185, 0.0
  %v1229 = vadd.f32 %v1227, %v1228
  %v1230 = vsel %vm1070, %v1186, 0.0
  %v1231 = vadd.f32 %v1229, %v1230
  %v1232 = vsel %vm1070, %v1187, 0.0
  %v1233 = vadd.f32 %v1231, %v1232
  %v1234 = vsel %vm1070, %v1188, 0.0
  %v1235 = vadd.f32 %v1233, %v1234
  %v1236 = vsel %vm1070, %v1189, 0.0
  %v1237 = vadd.f32 %v1235, %v1236
  %v1238 = vsel %vm1070, %v1190, 0.0
  %v1239 = vadd.f32 %v1237, %v1238
  %v1240 = vsel %vm1070, %v1191, 0.0
  %v1241 = vadd.f32 %v1239, %v1240
  %v1242 = vsel %vm1070, %v1192, 0.0
  %v1243 = vadd.f32 %v1241, %v1242
  %v1244 = vsel %vm1070, %v1193, 0.0
  %v1245 = vadd.f32 %v1243, %v1244
  %v1246 = vsel %vm1070, %v1194, 0.0
  %v1247 = vadd.f32 %v1245, %v1246
  %v1248 = vsel %vm1070, %v1195, 0.0
  %v1249 = vadd.f32 %v1247, %v1248
  %v1250 = vsel %vm1070, %v1196, 0.0
  %v1251 = vadd.f32 %v1249, %v1250
  %v1252 = vsel %vm1070, %v1197, 0.0
  %v1253 = vadd.f32 %v1251, %v1252
  %v1254 = vsel %vm1070, %v1198, 0.0
  %v1255 = vadd.f32 %v1253, %v1254
  %v1256 = vsel %vm1070, %v1199, 0.0
  %v1257 = vadd.f32 %v1255, %v1256
  %v1258 = vsel %vm1070, %v1200, 0.0
  %v1259 = vadd.f32 %v1257, %v1258
  %v1260 = vsel %vm1070, %v1201, 0.0
  %v1261 = vadd.f32 %v1259, %v1260
  %v1262 = vsel %vm1070, %v1202, 0.0
  %v1263 = vadd.f32 %v1261, %v1262
  %v1264 = vsel %vm1070, %v1203, 0.0
  %v1265 = vadd.f32 %v1263, %v1264
  %v1266 = vsel %vm1070, %v1204, 0.0
  %v1267 = vadd.f32 %v1265, %v1266
  %v1268 = vrot.slane %v1267, 4
  %v1269 = vadd.f32 %v1267, %v1268
  %v1270 = vrot.slane %v1269, 2
  %v1271 = vadd.f32 %v1269, %v1270
  %v1272 = vrot.slane %v1271, 1
  %v1273 = vadd.f32 %v1271, %v1272
  %v1274 = vmul.f32 %v1273, %v489
  %v1275 = vld [vmem:[%s7] sm:$0x1]
  %v1276 = vadd.f32 %v1274, 1e-05
  %v1277 = vrsqrt.pop %v1276
  %v1278 = vmul.f32 %v1275, %v1277
  %v1280 = vlaneseq
  %v1281 = vshrl.u32 %v1280, 7
  %v1282 = vsub.s32 0, %v1281
  %v1283 = vrot.slane %v1278, %v1282
  %v1285 = vmul.f32 %v1141, %v1283
  %v1286 = vmul.f32 %v1142, %v1283
  %v1287 = vmul.f32 %v1143, %v1283
  %v1288 = vmul.f32 %v1144, %v1283
  %v1289 = vmul.f32 %v1145, %v1283
  %v1290 = vmul.f32 %v1146, %v1283
  %v1291 = vmul.f32 %v1147, %v1283
  %v1292 = vmul.f32 %v1148, %v1283
  %v1293 = vmul.f32 %v1149, %v1283
  %v1294 = vmul.f32 %v1150, %v1283
  %v1295 = vmul.f32 %v1151, %v1283
  %v1296 = vmul.f32 %v1152, %v1283
  %v1297 = vmul.f32 %v1153, %v1283
  %v1298 = vmul.f32 %v1154, %v1283
  %v1299 = vmul.f32 %v1155, %v1283
  %v1300 = vmul.f32 %v1156, %v1283
  %v1301 = vmul.f32 %v1157, %v1283
  %v1302 = vmul.f32 %v1158, %v1283
  %v1303 = vmul.f32 %v1159, %v1283
  %v1304 = vmul.f32 %v1160, %v1283
  %v1305 = vmul.f32 %v1161, %v1283
  %v1306 = vmul.f32 %v1162, %v1283
  %v1307 = vmul.f32 %v1163, %v1283
  %v1308 = vmul.f32 %v1164, %v1283
  %v1309 = vmul.f32 %v1165, %v1283
  %v1310 = vmul.f32 %v1166, %v1283
  %v1311 = vmul.f32 %v1167, %v1283
  %v1312 = vmul.f32 %v1168, %v1283
  %v1313 = vmul.f32 %v1169, %v1283
  %v1314 = vmul.f32 %v1170, %v1283
  %v1315 = vmul.f32 %v1171, %v1283
  %v1316 = vmul.f32 %v1172, %v1283
  %v1317 = vld [vmem:[%s8] sm:$0x1]
  %v1319 = vlaneseq
  %v1320 = vshrl.u32 %v1319, 7
  %v1321 = vsub.s32 0, %v1320
  %v1322 = vrot.slane %v1317, %v1321
  %v1324 = vadd.f32 %v1285, %v1322
  %v1325 = vadd.f32 %v1286, %v1322
  %v1326 = vadd.f32 %v1287, %v1322
  %v1327 = vadd.f32 %v1288, %v1322
  %v1328 = vadd.f32 %v1289, %v1322
  %v1329 = vadd.f32 %v1290, %v1322
  %v1330 = vadd.f32 %v1291, %v1322
  %v1331 = vadd.f32 %v1292, %v1322
  %v1332 = vadd.f32 %v1293, %v1322
  %v1333 = vadd.f32 %v1294, %v1322
  %v1334 = vadd.f32 %v1295, %v1322
  %v1335 = vadd.f32 %v1296, %v1322
  %v1336 = vadd.f32 %v1297, %v1322
  %v1337 = vadd.f32 %v1298, %v1322
  %v1338 = vadd.f32 %v1299, %v1322
  %v1339 = vadd.f32 %v1300, %v1322
  %v1340 = vadd.f32 %v1301, %v1322
  %v1341 = vadd.f32 %v1302, %v1322
  %v1342 = vadd.f32 %v1303, %v1322
  %v1343 = vadd.f32 %v1304, %v1322
  %v1344 = vadd.f32 %v1305, %v1322
  %v1345 = vadd.f32 %v1306, %v1322
  %v1346 = vadd.f32 %v1307, %v1322
  %v1347 = vadd.f32 %v1308, %v1322
  %v1348 = vadd.f32 %v1309, %v1322
  %v1349 = vadd.f32 %v1310, %v1322
  %v1350 = vadd.f32 %v1311, %v1322
  %v1351 = vadd.f32 %v1312, %v1322
  %v1352 = vadd.f32 %v1313, %v1322
  %v1353 = vadd.f32 %v1314, %v1322
  %v1354 = vadd.f32 %v1315, %v1322
  %v1355 = vadd.f32 %v1316, %v1322
  %v1356 = vmax.f32 %v1324, 0.0
  %v1357 = vmax.f32 %v1325, 0.0
  %v1358 = vmax.f32 %v1326, 0.0
  %v1359 = vmax.f32 %v1327, 0.0
  %v1360 = vmax.f32 %v1328, 0.0
  %v1361 = vmax.f32 %v1329, 0.0
  %v1362 = vmax.f32 %v1330, 0.0
  %v1363 = vmax.f32 %v1331, 0.0
  %v1364 = vmax.f32 %v1332, 0.0
  %v1365 = vmax.f32 %v1333, 0.0
  %v1366 = vmax.f32 %v1334, 0.0
  %v1367 = vmax.f32 %v1335, 0.0
  %v1368 = vmax.f32 %v1336, 0.0
  %v1369 = vmax.f32 %v1337, 0.0
  %v1370 = vmax.f32 %v1338, 0.0
  %v1371 = vmax.f32 %v1339, 0.0
  %v1372 = vmax.f32 %v1340, 0.0
  %v1373 = vmax.f32 %v1341, 0.0
  %v1374 = vmax.f32 %v1342, 0.0
  %v1375 = vmax.f32 %v1343, 0.0
  %v1376 = vmax.f32 %v1344, 0.0
  %v1377 = vmax.f32 %v1345, 0.0
  %v1378 = vmax.f32 %v1346, 0.0
  %v1379 = vmax.f32 %v1347, 0.0
  %v1380 = vmax.f32 %v1348, 0.0
  %v1381 = vmax.f32 %v1349, 0.0
  %v1382 = vmax.f32 %v1350, 0.0
  %v1383 = vmax.f32 %v1351, 0.0
  %v1384 = vmax.f32 %v1352, 0.0
  %v1385 = vmax.f32 %v1353, 0.0
  %v1386 = vmax.f32 %v1354, 0.0
  %v1387 = vmax.f32 %v1355, 0.0
  %v1388 = vld [vmem:[%s9] sm:$0xff]
  %v1389 = vld [vmem:[%s9 + $0x8] sm:$0xff]
  %v1390 = vld [vmem:[%s10] sm:$0x1]
  %v1392 = vlaneseq
  %v1393 = vshrl.u32 %v1392, 7
  %v1394 = vsub.s32 0, %v1393
  %v1395 = vrot.slane %v1390, %v1394
  %v1398 = vsel %vm1070, %v1356, 0
  %v1401 = vsel %vm1070, %v1357, 0
  %v1404 = vsel %vm1070, %v1358, 0
  %v1407 = vsel %vm1070, %v1359, 0
  %v1410 = vsel %vm1070, %v1360, 0
  %v1413 = vsel %vm1070, %v1361, 0
  %v1416 = vsel %vm1070, %v1362, 0
  %v1419 = vsel %vm1070, %v1363, 0
  %v1422 = vsel %vm1070, %v1364, 0
  %v1425 = vsel %vm1070, %v1365, 0
  %v1428 = vsel %vm1070, %v1366, 0
  %v1431 = vsel %vm1070, %v1367, 0
  %v1434 = vsel %vm1070, %v1368, 0
  %v1437 = vsel %vm1070, %v1369, 0
  %v1440 = vsel %vm1070, %v1370, 0
  %v1443 = vsel %vm1070, %v1371, 0
  %v1446 = vsel %vm1070, %v1372, 0
  %v1449 = vsel %vm1070, %v1373, 0
  %v1452 = vsel %vm1070, %v1374, 0
  %v1455 = vsel %vm1070, %v1375, 0
  %v1458 = vsel %vm1070, %v1376, 0
  %v1461 = vsel %vm1070, %v1377, 0
  %v1464 = vsel %vm1070, %v1378, 0
  %v1467 = vsel %vm1070, %v1379, 0
  %v1470 = vsel %vm1070, %v1380, 0
  %v1473 = vsel %vm1070, %v1381, 0
  %v1476 = vsel %vm1070, %v1382, 0
  %v1479 = vsel %vm1070, %v1383, 0
  %v1482 = vsel %vm1070, %v1384, 0
  %v1485 = vsel %vm1070, %v1385, 0
  %v1488 = vsel %vm1070, %v1386, 0
  %v1491 = vsel %vm1070, %v1387, 0
  %1493 = vmatprep.subr.mxu0 0.0
  %1494 = vmatpush1.msra.mxu0 %v1388
  %1495 = vmatprep.subr.mxu0 0.0
  %1496 = vmatpush1.msra.mxu0 %v1389
  %1497 = vmatprep.subr.mxu0 0.0
  %1498 = vmatpush1.msra.mxu0 0.0
  %1499 = vmatprep.subr.mxu0 0.0
  %1500 = vmatpush1.msra.mxu0 0.0
  %1501 = vmatprep.subr.mxu0 0.0
  %1502 = vmatpush1.msra.mxu0 0.0
  %1503 = vmatprep.subr.mxu0 0.0
  %1504 = vmatpush1.msra.mxu0 0.0
  %1505 = vmatprep.subr.mxu0 0.0
  %1506 = vmatpush1.msra.mxu0 0.0
  %1507 = vmatprep.subr.mxu0 0.0
  %1508 = vmatpush1.msra.mxu0 0.0
  %1509 = vmatprep.subr.mxu0 0.0
  %1510 = vmatpush1.msra.mxu0 0.0
  %1511 = vmatprep.subr.mxu0 0.0
  %1512 = vmatpush1.msra.mxu0 0.0
  %1513 = vmatprep.subr.mxu0 0.0
  %1514 = vmatpush1.msra.mxu0 0.0
  %1515 = vmatprep.subr.mxu0 0.0
  %1516 = vmatpush1.msra.mxu0 0.0
  %1517 = vmatprep.subr.mxu0 0.0
  %1518 = vmatpush1.msra.mxu0 0.0
  %1519 = vmatprep.subr.mxu0 0.0
  %1520 = vmatpush1.msra.mxu0 0.0
  %1521 = vmatprep.subr.mxu0 0.0
  %1522 = vmatpush1.msra.mxu0 0.0
  %1523 = vmatprep.subr.mxu0 0.0
  %1524 = vmatpush1.msra.mxu0 0.0
  %1525 = vmatprep.subr.mxu0 0.0
  %1526 = vmatpush1.msra.mxu0 0.0
  %1527 = vmatprep.subr.mxu0 0.0
  %1528 = vmatpush1.msra.mxu0 0.0
  %1529 = vmatprep.subr.mxu0 0.0
  %1530 = vmatpush1.msra.mxu0 0.0
  %1531 = vmatprep.subr.mxu0 0.0
  %1532 = vmatpush1.msra.mxu0 0.0
  %1533 = vmatprep.subr.mxu0 0.0
  %1534 = vmatpush1.msra.mxu0 0.0
  %1535 = vmatprep.subr.mxu0 0.0
  %1536 = vmatpush1.msra.mxu0 0.0
  %1537 = vmatprep.subr.mxu0 0.0
  %1538 = vmatpush1.msra.mxu0 0.0
  %1539 = vmatprep.subr.mxu0 0.0
  %1540 = vmatpush1.msra.mxu0 0.0
  %1541 = vmatprep.subr.mxu0 0.0
  %1542 = vmatpush1.msra.mxu0 0.0
  %1543 = vmatprep.subr.mxu0 0.0
  %1544 = vmatpush1.msra.mxu0 0.0
  %1545 = vmatprep.subr.mxu0 0.0
  %1546 = vmatpush1.msra.mxu0 0.0
  %1547 = vmatprep.subr.mxu0 0.0
  %1548 = vmatpush1.msra.mxu0 0.0
  %1549 = vmatprep.subr.mxu0 0.0
  %1550 = vmatpush1.msra.mxu0 0.0
  %1551 = vmatprep.subr.mxu0 0.0
  %1552 = vmatpush1.msra.mxu0 0.0
  %1553 = vmatprep.subr.mxu0 0.0
  %1554 = vmatpush1.msra.mxu0 0.0
  %1555 = vmatprep.subr.mxu0 0.0
  %1556 = vmatpush1.msra.mxu0 0.0
  %1557 = vmatprep.mubr.f32.mxu0 0.0
  %1558 = vmatmul.mubr.f32.gmra.mrb[0].mxu0 %v1398
  %v1559 = vpop.f32.mrb[0].mxu0
  %v1560 = vadd.f32 %v1395, %v1559
  %v1561 = vpop.f32.mrb[0].mxu0
  %1562 = vmatprep.mubr.f32.mxu0 0.0
  %1563 = vmatmul.mubr.f32.gmra.mrb[0].mxu0 %v1401
  %v1564 = vpop.f32.mrb[0].mxu0
  %v1565 = vadd.f32 %v1395, %v1564
  %v1566 = vpop.f32.mrb[0].mxu0
  %1567 = vmatprep.mubr.f32.mxu0 0.0
  %1568 = vmatmul.mubr.f32.gmra.mrb[0].mxu0 %v1404
  %v1569 = vpop.f32.mrb[0].mxu0
  %v1570 = vadd.f32 %v1395, %v1569
  %v1571 = vpop.f32.mrb[0].mxu0
  %1572 = vmatprep.mubr.f32.mxu0 0.0
  %1573 = vmatmul.mubr.f32.gmra.mrb[0].mxu0 %v1407
  %v1574 = vpop.f32.mrb[0].mxu0
  %v1575 = vadd.f32 %v1395, %v1574
  %v1576 = vpop.f32.mrb[0].mxu0
  %1577 = vmatprep.mubr.f32.mxu0 0.0
  %1578 = vmatmul.mubr.f32.gmra.mrb[0].mxu0 %v1410
  %v1579 = vpop.f32.mrb[0].mxu0
  %v1580 = vadd.f32 %v1395, %v1579
  %v1581 = vpop.f32.mrb[0].mxu0
  %1582 = vmatprep.mubr.f32.mxu0 0.0
  %1583 = vmatmul.mubr.f32.gmra.mrb[0].mxu0 %v1413
  %v1584 = vpop.f32.mrb[0].mxu0
  %v1585 = vadd.f32 %v1395, %v1584
  %v1586 = vpop.f32.mrb[0].mxu0
  %1587 = vmatprep.mubr.f32.mxu0 0.0
  %1588 = vmatmul.mubr.f32.gmra.mrb[0].mxu0 %v1416
  %v1589 = vpop.f32.mrb[0].mxu0
  %v1590 = vadd.f32 %v1395, %v1589
  %v1591 = vpop.f32.mrb[0].mxu0
  %1592 = vmatprep.mubr.f32.mxu0 0.0
  %1593 = vmatmul.mubr.f32.gmra.mrb[0].mxu0 %v1419
  %v1594 = vpop.f32.mrb[0].mxu0
  %v1595 = vadd.f32 %v1395, %v1594
  %v1596 = vpop.f32.mrb[0].mxu0
  %1597 = vmatprep.mubr.f32.mxu0 0.0
  %1598 = vmatmul.mubr.f32.gmra.mrb[0].mxu0 %v1422
  %v1599 = vpop.f32.mrb[0].mxu0
  %v1600 = vadd.f32 %v1395, %v1599
  %v1601 = vpop.f32.mrb[0].mxu0
  %1602 = vmatprep.mubr.f32.mxu0 0.0
  %1603 = vmatmul.mubr.f32.gmra.mrb[0].mxu0 %v1425
  %v1604 = vpop.f32.mrb[0].mxu0
  %v1605 = vadd.f32 %v1395, %v1604
  %v1606 = vpop.f32.mrb[0].mxu0
  %1607 = vmatprep.mubr.f32.mxu0 0.0
  %1608 = vmatmul.mubr.f32.gmra.mrb[0].mxu0 %v1428
  %v1609 = vpop.f32.mrb[0].mxu0
  %v1610 = vadd.f32 %v1395, %v1609
  %v1611 = vpop.f32.mrb[0].mxu0
  %1612 = vmatprep.mubr.f32.mxu0 0.0
  %1613 = vmatmul.mubr.f32.gmra.mrb[0].mxu0 %v1431
  %v1614 = vpop.f32.mrb[0].mxu0
  %v1615 = vadd.f32 %v1395, %v1614
  %v1616 = vpop.f32.mrb[0].mxu0
  %1617 = vmatprep.mubr.f32.mxu0 0.0
  %1618 = vmatmul.mubr.f32.gmra.mrb[0].mxu0 %v1434
  %v1619 = vpop.f32.mrb[0].mxu0
  %v1620 = vadd.f32 %v1395, %v1619
  %v1621 = vpop.f32.mrb[0].mxu0
  %1622 = vmatprep.mubr.f32.mxu0 0.0
  %1623 = vmatmul.mubr.f32.gmra.mrb[0].mxu0 %v1437
  %v1624 = vpop.f32.mrb[0].mxu0
  %v1625 = vadd.f32 %v1395, %v1624
  %v1626 = vpop.f32.mrb[0].mxu0
  %1627 = vmatprep.mubr.f32.mxu0 0.0
  %1628 = vmatmul.mubr.f32.gmra.mrb[0].mxu0 %v1440
  %v1629 = vpop.f32.mrb[0].mxu0
  %v1630 = vadd.f32 %v1395, %v1629
  %v1631 = vpop.f32.mrb[0].mxu0
  %1632 = vmatprep.mubr.f32.mxu0 0.0
  %1633 = vmatmul.mubr.f32.gmra.mrb[0].mxu0 %v1443
  %v1634 = vpop.f32.mrb[0].mxu0
  %v1635 = vadd.f32 %v1395, %v1634
  %v1636 = vpop.f32.mrb[0].mxu0
  %1637 = vmatprep.mubr.f32.mxu0 0.0
  %1638 = vmatmul.mubr.f32.gmra.mrb[0].mxu0 %v1446
  %v1639 = vpop.f32.mrb[0].mxu0
  %v1640 = vadd.f32 %v1395, %v1639
  %v1641 = vpop.f32.mrb[0].mxu0
  %1642 = vmatprep.mubr.f32.mxu0 0.0
  %1643 = vmatmul.mubr.f32.gmra.mrb[0].mxu0 %v1449
  %v1644 = vpop.f32.mrb[0].mxu0
  %v1645 = vadd.f32 %v1395, %v1644
  %v1646 = vpop.f32.mrb[0].mxu0
  %1647 = vmatprep.mubr.f32.mxu0 0.0
  %1648 = vmatmul.mubr.f32.gmra.mrb[0].mxu0 %v1452
  %v1649 = vpop.f32.mrb[0].mxu0
  %v1650 = vadd.f32 %v1395, %v1649
  %v1651 = vpop.f32.mrb[0].mxu0
  %1652 = vmatprep.mubr.f32.mxu0 0.0
  %1653 = vmatmul.mubr.f32.gmra.mrb[0].mxu0 %v1455
  %v1654 = vpop.f32.mrb[0].mxu0
  %v1655 = vadd.f32 %v1395, %v1654
  %v1656 = vpop.f32.mrb[0].mxu0
  %1657 = vmatprep.mubr.f32.mxu0 0.0
  %1658 = vmatmul.mubr.f32.gmra.mrb[0].mxu0 %v1458
  %v1659 = vpop.f32.mrb[0].mxu0
  %v1660 = vadd.f32 %v1395, %v1659
  %v1661 = vpop.f32.mrb[0].mxu0
  %1662 = vmatprep.mubr.f32.mxu0 0.0
  %1663 = vmatmul.mubr.f32.gmra.mrb[0].mxu0 %v1461
  %v1664 = vpop.f32.mrb[0].mxu0
  %v1665 = vadd.f32 %v1395, %v1664
  %v1666 = vpop.f32.mrb[0].mxu0
  %1667 = vmatprep.mubr.f32.mxu0 0.0
  %1668 = vmatmul.mubr.f32.gmra.mrb[0].mxu0 %v1464
  %v1669 = vpop.f32.mrb[0].mxu0
  %v1670 = vadd.f32 %v1395, %v1669
  %v1671 = vpop.f32.mrb[0].mxu0
  %1672 = vmatprep.mubr.f32.mxu0 0.0
  %1673 = vmatmul.mubr.f32.gmra.mrb[0].mxu0 %v1467
  %v1674 = vpop.f32.mrb[0].mxu0
  %v1675 = vadd.f32 %v1395, %v1674
  %v1676 = vpop.f32.mrb[0].mxu0
  %1677 = vmatprep.mubr.f32.mxu0 0.0
  %1678 = vmatmul.mubr.f32.gmra.mrb[0].mxu0 %v1470
  %v1679 = vpop.f32.mrb[0].mxu0
  %v1680 = vadd.f32 %v1395, %v1679
  %v1681 = vpop.f32.mrb[0].mxu0
  %1682 = vmatprep.mubr.f32.mxu0 0.0
  %1683 = vmatmul.mubr.f32.gmra.mrb[0].mxu0 %v1473
  %v1684 = vpop.f32.mrb[0].mxu0
  %v1685 = vadd.f32 %v1395, %v1684
  %v1686 = vpop.f32.mrb[0].mxu0
  %1687 = vmatprep.mubr.f32.mxu0 0.0
  %1688 = vmatmul.mubr.f32.gmra.mrb[0].mxu0 %v1476
  %v1689 = vpop.f32.mrb[0].mxu0
  %v1690 = vadd.f32 %v1395, %v1689
  %v1691 = vpop.f32.mrb[0].mxu0
  %1692 = vmatprep.mubr.f32.mxu0 0.0
  %1693 = vmatmul.mubr.f32.gmra.mrb[0].mxu0 %v1479
  %v1694 = vpop.f32.mrb[0].mxu0
  %v1695 = vadd.f32 %v1395, %v1694
  %v1696 = vpop.f32.mrb[0].mxu0
  %1697 = vmatprep.mubr.f32.mxu0 0.0
  %1698 = vmatmul.mubr.f32.gmra.mrb[0].mxu0 %v1482
  %v1699 = vpop.f32.mrb[0].mxu0
  %v1700 = vadd.f32 %v1395, %v1699
  %v1701 = vpop.f32.mrb[0].mxu0
  %1702 = vmatprep.mubr.f32.mxu0 0.0
  %1703 = vmatmul.mubr.f32.gmra.mrb[0].mxu0 %v1485
  %v1704 = vpop.f32.mrb[0].mxu0
  %v1705 = vadd.f32 %v1395, %v1704
  %v1706 = vpop.f32.mrb[0].mxu0
  %1707 = vmatprep.mubr.f32.mxu0 0.0
  %1708 = vmatmul.mubr.f32.gmra.mrb[0].mxu0 %v1488
  %v1709 = vpop.f32.mrb[0].mxu0
  %v1710 = vadd.f32 %v1395, %v1709
  %v1711 = vpop.f32.mrb[0].mxu0
  %1712 = vmatprep.mubr.f32.mxu0 0.0
  %1713 = vmatmul.mubr.f32.gmra.mrb[0].mxu0 %v1491
  %v1714 = vpop.f32.mrb[0].mxu0
  %v1715 = vadd.f32 %v1395, %v1714
  %v1716 = vpop.f32.mrb[0].mxu0
  %1717 = vdwg.mxu0
  %vm1718 = vcmask 64512
  %v1719 = vsel %vm1718, %v1560, 0.0
  %v1720 = vsel %vm1718, %v1565, 0.0
  %v1721 = vadd.f32 %v1719, %v1720
  %v1722 = vsel %vm1718, %v1570, 0.0
  %v1723 = vadd.f32 %v1721, %v1722
  %v1724 = vsel %vm1718, %v1575, 0.0
  %v1725 = vadd.f32 %v1723, %v1724
  %v1726 = vsel %vm1718, %v1580, 0.0
  %v1727 = vadd.f32 %v1725, %v1726
  %v1728 = vsel %vm1718, %v1585, 0.0
  %v1729 = vadd.f32 %v1727, %v1728
  %v1730 = vsel %vm1718, %v1590, 0.0
  %v1731 = vadd.f32 %v1729, %v1730
  %v1732 = vsel %vm1718, %v1595, 0.0
  %v1733 = vadd.f32 %v1731, %v1732
  %v1734 = vsel %vm1718, %v1600, 0.0
  %v1735 = vadd.f32 %v1733, %v1734
  %v1736 = vsel %vm1718, %v1605, 0.0
  %v1737 = vadd.f32 %v1735, %v1736
  %v1738 = vsel %vm1718, %v1610, 0.0
  %v1739 = vadd.f32 %v1737, %v1738
  %v1740 = vsel %vm1718, %v1615, 0.0
  %v1741 = vadd.f32 %v1739, %v1740
  %v1742 = vsel %vm1718, %v1620, 0.0
  %v1743 = vadd.f32 %v1741, %v1742
  %v1744 = vsel %vm1718, %v1625, 0.0
  %v1745 = vadd.f32 %v1743, %v1744
  %v1746 = vsel %vm1718, %v1630, 0.0
  %v1747 = vadd.f32 %v1745, %v1746
  %v1748 = vsel %vm1718, %v1635, 0.0
  %v1749 = vadd.f32 %v1747, %v1748
  %v1750 = vsel %vm1718, %v1640, 0.0
  %v1751 = vadd.f32 %v1749, %v1750
  %v1752 = vsel %vm1718, %v1645, 0.0
  %v1753 = vadd.f32 %v1751, %v1752
  %v1754 = vsel %vm1718, %v1650, 0.0
  %v1755 = vadd.f32 %v1753, %v1754
  %v1756 = vsel %vm1718, %v1655, 0.0
  %v1757 = vadd.f32 %v1755, %v1756
  %v1758 = vsel %vm1718, %v1660, 0.0
  %v1759 = vadd.f32 %v1757, %v1758
  %v1760 = vsel %vm1718, %v1665, 0.0
  %v1761 = vadd.f32 %v1759, %v1760
  %v1762 = vsel %vm1718, %v1670, 0.0
  %v1763 = vadd.f32 %v1761, %v1762
  %v1764 = vsel %vm1718, %v1675, 0.0
  %v1765 = vadd.f32 %v1763, %v1764
  %v1766 = vsel %vm1718, %v1680, 0.0
  %v1767 = vadd.f32 %v1765, %v1766
  %v1768 = vsel %vm1718, %v1685, 0.0
  %v1769 = vadd.f32 %v1767, %v1768
  %v1770 = vsel %vm1718, %v1690, 0.0
  %v1771 = vadd.f32 %v1769, %v1770
  %v1772 = vsel %vm1718, %v1695, 0.0
  %v1773 = vadd.f32 %v1771, %v1772
  %v1774 = vsel %vm1718, %v1700, 0.0
  %v1775 = vadd.f32 %v1773, %v1774
  %v1776 = vsel %vm1718, %v1705, 0.0
  %v1777 = vadd.f32 %v1775, %v1776
  %v1778 = vsel %vm1718, %v1710, 0.0
  %v1779 = vadd.f32 %v1777, %v1778
  %v1780 = vsel %vm1718, %v1715, 0.0
  %v1781 = vadd.f32 %v1779, %v1780
  %v1782 = vrot.slane %v1781, 4
  %v1783 = vadd.f32 %v1781, %v1782
  %v1784 = vrot.slane %v1783, 2
  %v1785 = vadd.f32 %v1783, %v1784
  %v1786 = vrot.slane %v1785, 1
  %v1787 = vadd.f32 %v1785, %v1786
  %v1788 = vmul.f32 %v1787, %v489
  %v1789 = vsub.f32 %v1560, %v1788
  %v1790 = vsub.f32 %v1565, %v1788
  %v1791 = vsub.f32 %v1570, %v1788
  %v1792 = vsub.f32 %v1575, %v1788
  %v1793 = vsub.f32 %v1580, %v1788
  %v1794 = vsub.f32 %v1585, %v1788
  %v1795 = vsub.f32 %v1590, %v1788
  %v1796 = vsub.f32 %v1595, %v1788
  %v1797 = vsub.f32 %v1600, %v1788
  %v1798 = vsub.f32 %v1605, %v1788
  %v1799 = vsub.f32 %v1610, %v1788
  %v1800 = vsub.f32 %v1615, %v1788
  %v1801 = vsub.f32 %v1620, %v1788
  %v1802 = vsub.f32 %v1625, %v1788
  %v1803 = vsub.f32 %v1630, %v1788
  %v1804 = vsub.f32 %v1635, %v1788
  %v1805 = vsub.f32 %v1640, %v1788
  %v1806 = vsub.f32 %v1645, %v1788
  %v1807 = vsub.f32 %v1650, %v1788
  %v1808 = vsub.f32 %v1655, %v1788
  %v1809 = vsub.f32 %v1660, %v1788
  %v1810 = vsub.f32 %v1665, %v1788
  %v1811 = vsub.f32 %v1670, %v1788
  %v1812 = vsub.f32 %v1675, %v1788
  %v1813 = vsub.f32 %v1680, %v1788
  %v1814 = vsub.f32 %v1685, %v1788
  %v1815 = vsub.f32 %v1690, %v1788
  %v1816 = vsub.f32 %v1695, %v1788
  %v1817 = vsub.f32 %v1700, %v1788
  %v1818 = vsub.f32 %v1705, %v1788
  %v1819 = vsub.f32 %v1710, %v1788
  %v1820 = vsub.f32 %v1715, %v1788
  %v1821 = vmul.f32 %v1789, %v1789
  %v1822 = vmul.f32 %v1790, %v1790
  %v1823 = vmul.f32 %v1791, %v1791
  %v1824 = vmul.f32 %v1792, %v1792
  %v1825 = vmul.f32 %v1793, %v1793
  %v1826 = vmul.f32 %v1794, %v1794
  %v1827 = vmul.f32 %v1795, %v1795
  %v1828 = vmul.f32 %v1796, %v1796
  %v1829 = vmul.f32 %v1797, %v1797
  %v1830 = vmul.f32 %v1798, %v1798
  %v1831 = vmul.f32 %v1799, %v1799
  %v1832 = vmul.f32 %v1800, %v1800
  %v1833 = vmul.f32 %v1801, %v1801
  %v1834 = vmul.f32 %v1802, %v1802
  %v1835 = vmul.f32 %v1803, %v1803
  %v1836 = vmul.f32 %v1804, %v1804
  %v1837 = vmul.f32 %v1805, %v1805
  %v1838 = vmul.f32 %v1806, %v1806
  %v1839 = vmul.f32 %v1807, %v1807
  %v1840 = vmul.f32 %v1808, %v1808
  %v1841 = vmul.f32 %v1809, %v1809
  %v1842 = vmul.f32 %v1810, %v1810
  %v1843 = vmul.f32 %v1811, %v1811
  %v1844 = vmul.f32 %v1812, %v1812
  %v1845 = vmul.f32 %v1813, %v1813
  %v1846 = vmul.f32 %v1814, %v1814
  %v1847 = vmul.f32 %v1815, %v1815
  %v1848 = vmul.f32 %v1816, %v1816
  %v1849 = vmul.f32 %v1817, %v1817
  %v1850 = vmul.f32 %v1818, %v1818
  %v1851 = vmul.f32 %v1819, %v1819
  %v1852 = vmul.f32 %v1820, %v1820
  %v1853 = vsel %vm1718, %v1821, 0.0
  %v1854 = vsel %vm1718, %v1822, 0.0
  %v1855 = vadd.f32 %v1853, %v1854
  %v1856 = vsel %vm1718, %v1823, 0.0
  %v1857 = vadd.f32 %v1855, %v1856
  %v1858 = vsel %vm1718, %v1824, 0.0
  %v1859 = vadd.f32 %v1857, %v1858
  %v1860 = vsel %vm1718, %v1825, 0.0
  %v1861 = vadd.f32 %v1859, %v1860
  %v1862 = vsel %vm1718, %v1826, 0.0
  %v1863 = vadd.f32 %v1861, %v1862
  %v1864 = vsel %vm1718, %v1827, 0.0
  %v1865 = vadd.f32 %v1863, %v1864
  %v1866 = vsel %vm1718, %v1828, 0.0
  %v1867 = vadd.f32 %v1865, %v1866
  %v1868 = vsel %vm1718, %v1829, 0.0
  %v1869 = vadd.f32 %v1867, %v1868
  %v1870 = vsel %vm1718, %v1830, 0.0
  %v1871 = vadd.f32 %v1869, %v1870
  %v1872 = vsel %vm1718, %v1831, 0.0
  %v1873 = vadd.f32 %v1871, %v1872
  %v1874 = vsel %vm1718, %v1832, 0.0
  %v1875 = vadd.f32 %v1873, %v1874
  %v1876 = vsel %vm1718, %v1833, 0.0
  %v1877 = vadd.f32 %v1875, %v1876
  %v1878 = vsel %vm1718, %v1834, 0.0
  %v1879 = vadd.f32 %v1877, %v1878
  %v1880 = vsel %vm1718, %v1835, 0.0
  %v1881 = vadd.f32 %v1879, %v1880
  %v1882 = vsel %vm1718, %v1836, 0.0
  %v1883 = vadd.f32 %v1881, %v1882
  %v1884 = vsel %vm1718, %v1837, 0.0
  %v1885 = vadd.f32 %v1883, %v1884
  %v1886 = vsel %vm1718, %v1838, 0.0
  %v1887 = vadd.f32 %v1885, %v1886
  %v1888 = vsel %vm1718, %v1839, 0.0
  %v1889 = vadd.f32 %v1887, %v1888
  %v1890 = vsel %vm1718, %v1840, 0.0
  %v1891 = vadd.f32 %v1889, %v1890
  %v1892 = vsel %vm1718, %v1841, 0.0
  %v1893 = vadd.f32 %v1891, %v1892
  %v1894 = vsel %vm1718, %v1842, 0.0
  %v1895 = vadd.f32 %v1893, %v1894
  %v1896 = vsel %vm1718, %v1843, 0.0
  %v1897 = vadd.f32 %v1895, %v1896
  %v1898 = vsel %vm1718, %v1844, 0.0
  %v1899 = vadd.f32 %v1897, %v1898
  %v1900 = vsel %vm1718, %v1845, 0.0
  %v1901 = vadd.f32 %v1899, %v1900
  %v1902 = vsel %vm1718, %v1846, 0.0
  %v1903 = vadd.f32 %v1901, %v1902
  %v1904 = vsel %vm1718, %v1847, 0.0
  %v1905 = vadd.f32 %v1903, %v1904
  %v1906 = vsel %vm1718, %v1848, 0.0
  %v1907 = vadd.f32 %v1905, %v1906
  %v1908 = vsel %vm1718, %v1849, 0.0
  %v1909 = vadd.f32 %v1907, %v1908
  %v1910 = vsel %vm1718, %v1850, 0.0
  %v1911 = vadd.f32 %v1909, %v1910
  %v1912 = vsel %vm1718, %v1851, 0.0
  %v1913 = vadd.f32 %v1911, %v1912
  %v1914 = vsel %vm1718, %v1852, 0.0
  %v1915 = vadd.f32 %v1913, %v1914
  %v1916 = vrot.slane %v1915, 4
  %v1917 = vadd.f32 %v1915, %v1916
  %v1918 = vrot.slane %v1917, 2
  %v1919 = vadd.f32 %v1917, %v1918
  %v1920 = vrot.slane %v1919, 1
  %v1921 = vadd.f32 %v1919, %v1920
  %v1922 = vmul.f32 %v1921, %v489
  %v1923 = vld [vmem:[%s11] sm:$0x1]
  %v1924 = vadd.f32 %v1922, 1e-05
  %v1925 = vrsqrt.pop %v1924
  %v1926 = vmul.f32 %v1923, %v1925
  %v1928 = vlaneseq
  %v1929 = vshrl.u32 %v1928, 7
  %v1930 = vsub.s32 0, %v1929
  %v1931 = vrot.slane %v1926, %v1930
  %v1933 = vmul.f32 %v1789, %v1931
  %v1934 = vmul.f32 %v1790, %v1931
  %v1935 = vmul.f32 %v1791, %v1931
  %v1936 = vmul.f32 %v1792, %v1931
  %v1937 = vmul.f32 %v1793, %v1931
  %v1938 = vmul.f32 %v1794, %v1931
  %v1939 = vmul.f32 %v1795, %v1931
  %v1940 = vmul.f32 %v1796, %v1931
  %v1941 = vmul.f32 %v1797, %v1931
  %v1942 = vmul.f32 %v1798, %v1931
  %v1943 = vmul.f32 %v1799, %v1931
  %v1944 = vmul.f32 %v1800, %v1931
  %v1945 = vmul.f32 %v1801, %v1931
  %v1946 = vmul.f32 %v1802, %v1931
  %v1947 = vmul.f32 %v1803, %v1931
  %v1948 = vmul.f32 %v1804, %v1931
  %v1949 = vmul.f32 %v1805, %v1931
  %v1950 = vmul.f32 %v1806, %v1931
  %v1951 = vmul.f32 %v1807, %v1931
  %v1952 = vmul.f32 %v1808, %v1931
  %v1953 = vmul.f32 %v1809, %v1931
  %v1954 = vmul.f32 %v1810, %v1931
  %v1955 = vmul.f32 %v1811, %v1931
  %v1956 = vmul.f32 %v1812, %v1931
  %v1957 = vmul.f32 %v1813, %v1931
  %v1958 = vmul.f32 %v1814, %v1931
  %v1959 = vmul.f32 %v1815, %v1931
  %v1960 = vmul.f32 %v1816, %v1931
  %v1961 = vmul.f32 %v1817, %v1931
  %v1962 = vmul.f32 %v1818, %v1931
  %v1963 = vmul.f32 %v1819, %v1931
  %v1964 = vmul.f32 %v1820, %v1931
  %v1965 = vld [vmem:[%s12] sm:$0x1]
  %v1967 = vlaneseq
  %v1968 = vshrl.u32 %v1967, 7
  %v1969 = vsub.s32 0, %v1968
  %v1970 = vrot.slane %v1965, %v1969
  %v1972 = vadd.f32 %v1933, %v1970
  %v1973 = vadd.f32 %v1934, %v1970
  %v1974 = vadd.f32 %v1935, %v1970
  %v1975 = vadd.f32 %v1936, %v1970
  %v1976 = vadd.f32 %v1937, %v1970
  %v1977 = vadd.f32 %v1938, %v1970
  %v1978 = vadd.f32 %v1939, %v1970
  %v1979 = vadd.f32 %v1940, %v1970
  %v1980 = vadd.f32 %v1941, %v1970
  %v1981 = vadd.f32 %v1942, %v1970
  %v1982 = vadd.f32 %v1943, %v1970
  %v1983 = vadd.f32 %v1944, %v1970
  %v1984 = vadd.f32 %v1945, %v1970
  %v1985 = vadd.f32 %v1946, %v1970
  %v1986 = vadd.f32 %v1947, %v1970
  %v1987 = vadd.f32 %v1948, %v1970
  %v1988 = vadd.f32 %v1949, %v1970
  %v1989 = vadd.f32 %v1950, %v1970
  %v1990 = vadd.f32 %v1951, %v1970
  %v1991 = vadd.f32 %v1952, %v1970
  %v1992 = vadd.f32 %v1953, %v1970
  %v1993 = vadd.f32 %v1954, %v1970
  %v1994 = vadd.f32 %v1955, %v1970
  %v1995 = vadd.f32 %v1956, %v1970
  %v1996 = vadd.f32 %v1957, %v1970
  %v1997 = vadd.f32 %v1958, %v1970
  %v1998 = vadd.f32 %v1959, %v1970
  %v1999 = vadd.f32 %v1960, %v1970
  %v2000 = vadd.f32 %v1961, %v1970
  %v2001 = vadd.f32 %v1962, %v1970
  %v2002 = vadd.f32 %v1963, %v1970
  %v2003 = vadd.f32 %v1964, %v1970
  %v2004 = vmax.f32 %v1972, 0.0
  %v2005 = vmax.f32 %v1973, 0.0
  %v2006 = vmax.f32 %v1974, 0.0
  %v2007 = vmax.f32 %v1975, 0.0
  %v2008 = vmax.f32 %v1976, 0.0
  %v2009 = vmax.f32 %v1977, 0.0
  %v2010 = vmax.f32 %v1978, 0.0
  %v2011 = vmax.f32 %v1979, 0.0
  %v2012 = vmax.f32 %v1980, 0.0
  %v2013 = vmax.f32 %v1981, 0.0
  %v2014 = vmax.f32 %v1982, 0.0
  %v2015 = vmax.f32 %v1983, 0.0
  %v2016 = vmax.f32 %v1984, 0.0
  %v2017 = vmax.f32 %v1985, 0.0
  %v2018 = vmax.f32 %v1986, 0.0
  %v2019 = vmax.f32 %v1987, 0.0
  %v2020 = vmax.f32 %v1988, 0.0
  %v2021 = vmax.f32 %v1989, 0.0
  %v2022 = vmax.f32 %v1990, 0.0
  %v2023 = vmax.f32 %v1991, 0.0
  %v2024 = vmax.f32 %v1992, 0.0
  %v2025 = vmax.f32 %v1993, 0.0
  %v2026 = vmax.f32 %v1994, 0.0
  %v2027 = vmax.f32 %v1995, 0.0
  %v2028 = vmax.f32 %v1996, 0.0
  %v2029 = vmax.f32 %v1997, 0.0
  %v2030 = vmax.f32 %v1998, 0.0
  %v2031 = vmax.f32 %v1999, 0.0
  %v2032 = vmax.f32 %v2000, 0.0
  %v2033 = vmax.f32 %v2001, 0.0
  %v2034 = vmax.f32 %v2002, 0.0
  %v2035 = vmax.f32 %v2003, 0.0
  %v2036 = vld [vmem:[%s13] sm:$0xff]
  %v2037 = vld [vmem:[%s14] sm:$0x1]
  %v2039 = vlaneseq
  %v2040 = vshrl.u32 %v2039, 7
  %v2041 = vsub.s32 0, %v2040
  %v2042 = vrot.slane %v2037, %v2041
  %v2045 = vsel %vm1718, %v2004, 0
  %v2048 = vsel %vm1718, %v2005, 0
  %v2051 = vsel %vm1718, %v2006, 0
  %v2054 = vsel %vm1718, %v2007, 0
  %v2057 = vsel %vm1718, %v2008, 0
  %v2060 = vsel %vm1718, %v2009, 0
  %v2063 = vsel %vm1718, %v2010, 0
  %v2066 = vsel %vm1718, %v2011, 0
  %v2069 = vsel %vm1718, %v2012, 0
  %v2072 = vsel %vm1718, %v2013, 0
  %v2075 = vsel %vm1718, %v2014, 0
  %v2078 = vsel %vm1718, %v2015, 0
  %v2081 = vsel %vm1718, %v2016, 0
  %v2084 = vsel %vm1718, %v2017, 0
  %v2087 = vsel %vm1718, %v2018, 0
  %v2090 = vsel %vm1718, %v2019, 0
  %v2093 = vsel %vm1718, %v2020, 0
  %v2096 = vsel %vm1718, %v2021, 0
  %v2099 = vsel %vm1718, %v2022, 0
  %v2102 = vsel %vm1718, %v2023, 0
  %v2105 = vsel %vm1718, %v2024, 0
  %v2108 = vsel %vm1718, %v2025, 0
  %v2111 = vsel %vm1718, %v2026, 0
  %v2114 = vsel %vm1718, %v2027, 0
  %v2117 = vsel %vm1718, %v2028, 0
  %v2120 = vsel %vm1718, %v2029, 0
  %v2123 = vsel %vm1718, %v2030, 0
  %v2126 = vsel %vm1718, %v2031, 0
  %v2129 = vsel %vm1718, %v2032, 0
  %v2132 = vsel %vm1718, %v2033, 0
  %v2135 = vsel %vm1718, %v2034, 0
  %v2138 = vsel %vm1718, %v2035, 0
  %2140 = vmatprep.subr.mxu0 0.0
  %2141 = vmatpush1.msra.mxu0 %v2036
  %2142 = vmatprep.subr.mxu0 0.0
  %2143 = vmatpush1.msra.mxu0 0.0
  %2144 = vmatprep.subr.mxu0 0.0
  %2145 = vmatpush1.msra.mxu0 0.0
  %2146 = vmatprep.subr.mxu0 0.0
  %2147 = vmatpush1.msra.mxu0 0.0
  %2148 = vmatprep.subr.mxu0 0.0
  %2149 = vmatpush1.msra.mxu0 0.0
  %2150 = vmatprep.subr.mxu0 0.0
  %2151 = vmatpush1.msra.mxu0 0.0
  %2152 = vmatprep.subr.mxu0 0.0
  %2153 = vmatpush1.msra.mxu0 0.0
  %2154 = vmatprep.subr.mxu0 0.0
  %2155 = vmatpush1.msra.mxu0 0.0
  %2156 = vmatprep.subr.mxu0 0.0
  %2157 = vmatpush1.msra.mxu0 0.0
  %2158 = vmatprep.subr.mxu0 0.0
  %2159 = vmatpush1.msra.mxu0 0.0
  %2160 = vmatprep.subr.mxu0 0.0
  %2161 = vmatpush1.msra.mxu0 0.0
  %2162 = vmatprep.subr.mxu0 0.0
  %2163 = vmatpush1.msra.mxu0 0.0
  %2164 = vmatprep.subr.mxu0 0.0
  %2165 = vmatpush1.msra.mxu0 0.0
  %2166 = vmatprep.subr.mxu0 0.0
  %2167 = vmatpush1.msra.mxu0 0.0
  %2168 = vmatprep.subr.mxu0 0.0
  %2169 = vmatpush1.msra.mxu0 0.0
  %2170 = vmatprep.subr.mxu0 0.0
  %2171 = vmatpush1.msra.mxu0 0.0
  %2172 = vmatprep.subr.mxu0 0.0
  %2173 = vmatpush1.msra.mxu0 0.0
  %2174 = vmatprep.subr.mxu0 0.0
  %2175 = vmatpush1.msra.mxu0 0.0
  %2176 = vmatprep.subr.mxu0 0.0
  %2177 = vmatpush1.msra.mxu0 0.0
  %2178 = vmatprep.subr.mxu0 0.0
  %2179 = vmatpush1.msra.mxu0 0.0
  %2180 = vmatprep.subr.mxu0 0.0
  %2181 = vmatpush1.msra.mxu0 0.0
  %2182 = vmatprep.subr.mxu0 0.0
  %2183 = vmatpush1.msra.mxu0 0.0
  %2184 = vmatprep.subr.mxu0 0.0
  %2185 = vmatpush1.msra.mxu0 0.0
  %2186 = vmatprep.subr.mxu0 0.0
  %2187 = vmatpush1.msra.mxu0 0.0
  %2188 = vmatprep.subr.mxu0 0.0
  %2189 = vmatpush1.msra.mxu0 0.0
  %2190 = vmatprep.subr.mxu0 0.0
  %2191 = vmatpush1.msra.mxu0 0.0
  %2192 = vmatprep.subr.mxu0 0.0
  %2193 = vmatpush1.msra.mxu0 0.0
  %2194 = vmatprep.subr.mxu0 0.0
  %2195 = vmatpush1.msra.mxu0 0.0
  %2196 = vmatprep.subr.mxu0 0.0
  %2197 = vmatpush1.msra.mxu0 0.0
  %2198 = vmatprep.subr.mxu0 0.0
  %2199 = vmatpush1.msra.mxu0 0.0
  %2200 = vmatprep.subr.mxu0 0.0
  %2201 = vmatpush1.msra.mxu0 0.0
  %2202 = vmatprep.subr.mxu0 0.0
  %2203 = vmatpush1.msra.mxu0 0.0
  %2204 = vmatprep.mubr.f32.mxu0 0.0
  %2205 = vmatmul.mubr.f32.gmra.mrb[0].mxu0 %v2045
  %v2206 = vpop.f32.mrb[0].mxu0
  %v2207 = vadd.f32 %v2042, %v2206
  %v2208 = vpop.f32.mrb[0].mxu0
  %2209 = vmatprep.mubr.f32.mxu0 0.0
  %2210 = vmatmul.mubr.f32.gmra.mrb[0].mxu0 %v2048
  %v2211 = vpop.f32.mrb[0].mxu0
  %v2212 = vadd.f32 %v2042, %v2211
  %v2213 = vpop.f32.mrb[0].mxu0
  %2214 = vmatprep.mubr.f32.mxu0 0.0
  %2215 = vmatmul.mubr.f32.gmra.mrb[0].mxu0 %v2051
  %v2216 = vpop.f32.mrb[0].mxu0
  %v2217 = vadd.f32 %v2042, %v2216
  %v2218 = vpop.f32.mrb[0].mxu0
  %2219 = vmatprep.mubr.f32.mxu0 0.0
  %2220 = vmatmul.mubr.f32.gmra.mrb[0].mxu0 %v2054
  %v2221 = vpop.f32.mrb[0].mxu0
  %v2222 = vadd.f32 %v2042, %v2221
  %v2223 = vpop.f32.mrb[0].mxu0
  %2224 = vmatprep.mubr.f32.mxu0 0.0
  %2225 = vmatmul.mubr.f32.gmra.mrb[0].mxu0 %v2057
  %v2226 = vpop.f32.mrb[0].mxu0
  %v2227 = vadd.f32 %v2042, %v2226
  %v2228 = vpop.f32.mrb[0].mxu0
  %2229 = vmatprep.mubr.f32.mxu0 0.0
  %2230 = vmatmul.mubr.f32.gmra.mrb[0].mxu0 %v2060
  %v2231 = vpop.f32.mrb[0].mxu0
  %v2232 = vadd.f32 %v2042, %v2231
  %v2233 = vpop.f32.mrb[0].mxu0
  %2234 = vmatprep.mubr.f32.mxu0 0.0
  %2235 = vmatmul.mubr.f32.gmra.mrb[0].mxu0 %v2063
  %v2236 = vpop.f32.mrb[0].mxu0
  %v2237 = vadd.f32 %v2042, %v2236
  %v2238 = vpop.f32.mrb[0].mxu0
  %2239 = vmatprep.mubr.f32.mxu0 0.0
  %2240 = vmatmul.mubr.f32.gmra.mrb[0].mxu0 %v2066
  %v2241 = vpop.f32.mrb[0].mxu0
  %v2242 = vadd.f32 %v2042, %v2241
  %v2243 = vpop.f32.mrb[0].mxu0
  %2244 = vmatprep.mubr.f32.mxu0 0.0
  %2245 = vmatmul.mubr.f32.gmra.mrb[0].mxu0 %v2069
  %v2246 = vpop.f32.mrb[0].mxu0
  %v2247 = vadd.f32 %v2042, %v2246
  %v2248 = vpop.f32.mrb[0].mxu0
  %2249 = vmatprep.mubr.f32.mxu0 0.0
  %2250 = vmatmul.mubr.f32.gmra.mrb[0].mxu0 %v2072
  %v2251 = vpop.f32.mrb[0].mxu0
  %v2252 = vadd.f32 %v2042, %v2251
  %v2253 = vpop.f32.mrb[0].mxu0
  %2254 = vmatprep.mubr.f32.mxu0 0.0
  %2255 = vmatmul.mubr.f32.gmra.mrb[0].mxu0 %v2075
  %v2256 = vpop.f32.mrb[0].mxu0
  %v2257 = vadd.f32 %v2042, %v2256
  %v2258 = vpop.f32.mrb[0].mxu0
  %2259 = vmatprep.mubr.f32.mxu0 0.0
  %2260 = vmatmul.mubr.f32.gmra.mrb[0].mxu0 %v2078
  %v2261 = vpop.f32.mrb[0].mxu0
  %v2262 = vadd.f32 %v2042, %v2261
  %v2263 = vpop.f32.mrb[0].mxu0
  %2264 = vmatprep.mubr.f32.mxu0 0.0
  %2265 = vmatmul.mubr.f32.gmra.mrb[0].mxu0 %v2081
  %v2266 = vpop.f32.mrb[0].mxu0
  %v2267 = vadd.f32 %v2042, %v2266
  %v2268 = vpop.f32.mrb[0].mxu0
  %2269 = vmatprep.mubr.f32.mxu0 0.0
  %2270 = vmatmul.mubr.f32.gmra.mrb[0].mxu0 %v2084
  %v2271 = vpop.f32.mrb[0].mxu0
  %v2272 = vadd.f32 %v2042, %v2271
  %v2273 = vpop.f32.mrb[0].mxu0
  %2274 = vmatprep.mubr.f32.mxu0 0.0
  %2275 = vmatmul.mubr.f32.gmra.mrb[0].mxu0 %v2087
  %v2276 = vpop.f32.mrb[0].mxu0
  %v2277 = vadd.f32 %v2042, %v2276
  %v2278 = vpop.f32.mrb[0].mxu0
  %2279 = vmatprep.mubr.f32.mxu0 0.0
  %2280 = vmatmul.mubr.f32.gmra.mrb[0].mxu0 %v2090
  %v2281 = vpop.f32.mrb[0].mxu0
  %v2282 = vadd.f32 %v2042, %v2281
  %v2283 = vpop.f32.mrb[0].mxu0
  %2284 = vmatprep.mubr.f32.mxu0 0.0
  %2285 = vmatmul.mubr.f32.gmra.mrb[0].mxu0 %v2093
  %v2286 = vpop.f32.mrb[0].mxu0
  %v2287 = vadd.f32 %v2042, %v2286
  %v2288 = vpop.f32.mrb[0].mxu0
  %2289 = vmatprep.mubr.f32.mxu0 0.0
  %2290 = vmatmul.mubr.f32.gmra.mrb[0].mxu0 %v2096
  %v2291 = vpop.f32.mrb[0].mxu0
  %v2292 = vadd.f32 %v2042, %v2291
  %v2293 = vpop.f32.mrb[0].mxu0
  %2294 = vmatprep.mubr.f32.mxu0 0.0
  %2295 = vmatmul.mubr.f32.gmra.mrb[0].mxu0 %v2099
  %v2296 = vpop.f32.mrb[0].mxu0
  %v2297 = vadd.f32 %v2042, %v2296
  %v2298 = vpop.f32.mrb[0].mxu0
  %2299 = vmatprep.mubr.f32.mxu0 0.0
  %2300 = vmatmul.mubr.f32.gmra.mrb[0].mxu0 %v2102
  %v2301 = vpop.f32.mrb[0].mxu0
  %v2302 = vadd.f32 %v2042, %v2301
  %v2303 = vpop.f32.mrb[0].mxu0
  %2304 = vmatprep.mubr.f32.mxu0 0.0
  %2305 = vmatmul.mubr.f32.gmra.mrb[0].mxu0 %v2105
  %v2306 = vpop.f32.mrb[0].mxu0
  %v2307 = vadd.f32 %v2042, %v2306
  %v2308 = vpop.f32.mrb[0].mxu0
  %2309 = vmatprep.mubr.f32.mxu0 0.0
  %2310 = vmatmul.mubr.f32.gmra.mrb[0].mxu0 %v2108
  %v2311 = vpop.f32.mrb[0].mxu0
  %v2312 = vadd.f32 %v2042, %v2311
  %v2313 = vpop.f32.mrb[0].mxu0
  %2314 = vmatprep.mubr.f32.mxu0 0.0
  %2315 = vmatmul.mubr.f32.gmra.mrb[0].mxu0 %v2111
  %v2316 = vpop.f32.mrb[0].mxu0
  %v2317 = vadd.f32 %v2042, %v2316
  %v2318 = vpop.f32.mrb[0].mxu0
  %2319 = vmatprep.mubr.f32.mxu0 0.0
  %2320 = vmatmul.mubr.f32.gmra.mrb[0].mxu0 %v2114
  %v2321 = vpop.f32.mrb[0].mxu0
  %v2322 = vadd.f32 %v2042, %v2321
  %v2323 = vpop.f32.mrb[0].mxu0
  %2324 = vmatprep.mubr.f32.mxu0 0.0
  %2325 = vmatmul.mubr.f32.gmra.mrb[0].mxu0 %v2117
  %v2326 = vpop.f32.mrb[0].mxu0
  %v2327 = vadd.f32 %v2042, %v2326
  %v2328 = vpop.f32.mrb[0].mxu0
  %2329 = vmatprep.mubr.f32.mxu0 0.0
  %2330 = vmatmul.mubr.f32.gmra.mrb[0].mxu0 %v2120
  %v2331 = vpop.f32.mrb[0].mxu0
  %v2332 = vadd.f32 %v2042, %v2331
  %v2333 = vpop.f32.mrb[0].mxu0
  %2334 = vmatprep.mubr.f32.mxu0 0.0
  %2335 = vmatmul.mubr.f32.gmra.mrb[0].mxu0 %v2123
  %v2336 = vpop.f32.mrb[0].mxu0
  %v2337 = vadd.f32 %v2042, %v2336
  %v2338 = vpop.f32.mrb[0].mxu0
  %2339 = vmatprep.mubr.f32.mxu0 0.0
  %2340 = vmatmul.mubr.f32.gmra.mrb[0].mxu0 %v2126
  %v2341 = vpop.f32.mrb[0].mxu0
  %v2342 = vadd.f32 %v2042, %v2341
  %v2343 = vpop.f32.mrb[0].mxu0
  %2344 = vmatprep.mubr.f32.mxu0 0.0
  %2345 = vmatmul.mubr.f32.gmra.mrb[0].mxu0 %v2129
  %v2346 = vpop.f32.mrb[0].mxu0
  %v2347 = vadd.f32 %v2042, %v2346
  %v2348 = vpop.f32.mrb[0].mxu0
  %2349 = vmatprep.mubr.f32.mxu0 0.0
  %2350 = vmatmul.mubr.f32.gmra.mrb[0].mxu0 %v2132
  %v2351 = vpop.f32.mrb[0].mxu0
  %v2352 = vadd.f32 %v2042, %v2351
  %v2353 = vpop.f32.mrb[0].mxu0
  %2354 = vmatprep.mubr.f32.mxu0 0.0
  %2355 = vmatmul.mubr.f32.gmra.mrb[0].mxu0 %v2135
  %v2356 = vpop.f32.mrb[0].mxu0
  %v2357 = vadd.f32 %v2042, %v2356
  %v2358 = vpop.f32.mrb[0].mxu0
  %2359 = vmatprep.mubr.f32.mxu0 0.0
  %2360 = vmatmul.mubr.f32.gmra.mrb[0].mxu0 %v2138
  %v2361 = vpop.f32.mrb[0].mxu0
  %v2362 = vadd.f32 %v2042, %v2361
  %v2363 = vpop.f32.mrb[0].mxu0
  %2364 = vdwg.mxu0
  %2365 = vst.msk [vmem:[%s15] sm:$0xff] %vm1718, %v2207
  %2366 = vst.msk [vmem:[%s15 + $0x8] sm:$0xff] %vm1718, %v2212
  %2367 = vst.msk [vmem:[%s15 + $0x10] sm:$0xff] %vm1718, %v2217
  %2368 = vst.msk [vmem:[%s15 + $0x18] sm:$0xff] %vm1718, %v2222
  %2369 = vst.msk [vmem:[%s15 + $0x20] sm:$0xff] %vm1718, %v2227
  %2370 = vst.msk [vmem:[%s15 + $0x28] sm:$0xff] %vm1718, %v2232
  %2371 = vst.msk [vmem:[%s15 + $0x30] sm:$0xff] %vm1718, %v2237
  %2372 = vst.msk [vmem:[%s15 + $0x38] sm:$0xff] %vm1718, %v2242
  %2373 = vst.msk [vmem:[%s15 + $0x40] sm:$0xff] %vm1718, %v2247
  %2374 = vst.msk [vmem:[%s15 + $0x48] sm:$0xff] %vm1718, %v2252
  %2375 = vst.msk [vmem:[%s15 + $0x50] sm:$0xff] %vm1718, %v2257
  %2376 = vst.msk [vmem:[%s15 + $0x58] sm:$0xff] %vm1718, %v2262
  %2377 = vst.msk [vmem:[%s15 + $0x60] sm:$0xff] %vm1718, %v2267
  %2378 = vst.msk [vmem:[%s15 + $0x68] sm:$0xff] %vm1718, %v2272
  %2379 = vst.msk [vmem:[%s15 + $0x70] sm:$0xff] %vm1718, %v2277
  %2380 = vst.msk [vmem:[%s15 + $0x78] sm:$0xff] %vm1718, %v2282
  %2381 = vst.msk [vmem:[%s15 + $0x80] sm:$0xff] %vm1718, %v2287
  %2382 = vst.msk [vmem:[%s15 + $0x88] sm:$0xff] %vm1718, %v2292
  %2383 = vst.msk [vmem:[%s15 + $0x90] sm:$0xff] %vm1718, %v2297
  %2384 = vst.msk [vmem:[%s15 + $0x98] sm:$0xff] %vm1718, %v2302
  %2385 = vst.msk [vmem:[%s15 + $0xa0] sm:$0xff] %vm1718, %v2307
  %2386 = vst.msk [vmem:[%s15 + $0xa8] sm:$0xff] %vm1718, %v2312
  %2387 = vst.msk [vmem:[%s15 + $0xb0] sm:$0xff] %vm1718, %v2317
  %2388 = vst.msk [vmem:[%s15 + $0xb8] sm:$0xff] %vm1718, %v2322
  %2389 = vst.msk [vmem:[%s15 + $0xc0] sm:$0xff] %vm1718, %v2327
  %2390 = vst.msk [vmem:[%s15 + $0xc8] sm:$0xff] %vm1718, %v2332
  %2391 = vst.msk [vmem:[%s15 + $0xd0] sm:$0xff] %vm1718, %v2337
  %2392 = vst.msk [vmem:[%s15 + $0xd8] sm:$0xff] %vm1718, %v2342
  %2393 = vst.msk [vmem:[%s15 + $0xe0] sm:$0xff] %vm1718, %v2347
  %2394 = vst.msk [vmem:[%s15 + $0xe8] sm:$0xff] %vm1718, %v2352
  %2395 = vst.msk [vmem:[%s15 + $0xf0] sm:$0xff] %vm1718, %v2357
  %2396 = vst.msk [vmem:[%s15 + $0xf8] sm:$0xff] %vm1718, %v2362
  // Predicated region
  $region62: #{mlp_readout.1} parent=0 // pred_check
    _
  $region63: #{mlp_readout.1} parent=0 // pred_check_branch
    %2398 = sbr.rel (0) target = $region65
  $region64: #{mlp_readout.1} parent=0 // pred_region
    _
  $region65: #{mlp_readout.1} parent=0 // pred_fallthru
    _
  // Predicated region
  $region66: #{mlp_readout.1} parent=0 // pred_check
    _
  $region67: #{mlp_readout.1} parent=0 // pred_check_branch
    %2400 = sbr.rel (0) target = $region69
  $region68: #{mlp_readout.1} parent=0 // pred_region
    _
  $region69: #{mlp_readout.1} parent=0 // pred_fallthru
    _

</llo_original>
